<compile_context>
chip_gen: v6e
topology: v6e:2x2x1
jax: 0.10.0
libtpu: 0.0.40
codegen_flags: <defaults>
</compile_context>

<pallas_src>
import jax
import jax.numpy as jnp
from jax.experimental import pallas as pl
from jax.experimental.pallas import tpu as pltpu


# --------------------------------------------------------------------------- #
# Kernel body: 4 matmuls + ReLU/ReLU/ReLU/Sigmoid, fully fused per batch tile. #
# --------------------------------------------------------------------------- #
def cdae_kernel(x_ref,
                w1_ref, b1_ref,
                w2_ref, b2_ref,
                w3_ref, b3_ref,
                w4_ref, b4_ref,
                dec_ref, enc_ref):
    cdt = w1_ref.dtype  # MXU input dtype (bf16 by default)

    x = x_ref[...]  # (tb, input_dim), already in compute dtype

    # encoder: Linear(input_dim, 64) -> ReLU   (f32 accumulate, f32 activation)
    h1 = jnp.dot(x, w1_ref[...], preferred_element_type=jnp.float32) + b1_ref[...]
    h1 = jnp.maximum(h1, 0.0)

    # encoder: Linear(64, encoding_dim) -> ReLU
    enc = jnp.dot(h1.astype(cdt), w2_ref[...],
                  preferred_element_type=jnp.float32) + b2_ref[...]
    enc = jnp.maximum(enc, 0.0)

    # decoder: Linear(encoding_dim, 64) -> ReLU
    h3 = jnp.dot(enc.astype(cdt), w3_ref[...],
                 preferred_element_type=jnp.float32) + b3_ref[...]
    h3 = jnp.maximum(h3, 0.0)

    # decoder: Linear(64, input_dim) -> Sigmoid
    logits = jnp.dot(h3.astype(cdt), w4_ref[...],
                     preferred_element_type=jnp.float32) + b4_ref[...]
    # sigmoid = 1 / (1 + exp(-z)): exp and approx-reciprocal both use the EUP
    # slot, keeping the epilogue off the (f32-only on v5e) VALU.
    dec = pl.reciprocal(1.0 + jnp.exp(-logits), approx=True)

    dec_ref[...] = dec.astype(dec_ref.dtype)
    enc_ref[...] = enc.astype(enc_ref.dtype)


# --------------------------------------------------------------------------- #
# VMEM-aware configuration.                                                    #
# --------------------------------------------------------------------------- #
def _vmem_capacity_bytes() -> int:
    """Physical VMEM of the local chip; conservative (v7x) fallback."""
    try:
        info = pltpu.get_tpu_info()
        cap = getattr(info, "vmem_capacity_bytes", None)
        if cap:
            return int(cap)
    except Exception:
        pass
    return 64 * 1024 * 1024


def _pick_batch_tile(B: int, bytes_per_row: int, stream_budget: int,
                     sublane: int, max_tile: int = 4096) -> int:
    """Largest tb that divides B, is a multiple of `sublane`, fits the
    streamed-tile VMEM budget, and leaves >= 4 grid steps when possible
    (2 per TensorCore on v7x), else >= 2 steps, else the full batch."""
    cap_vmem = max(stream_budget // max(bytes_per_row, 1), sublane)
    for min_steps in (4, 2):
        cap = min(max_tile, cap_vmem, B // min_steps)
        cap -= cap % sublane
        for tb in range(cap, sublane - 1, -sublane):
            if B % tb == 0:
                return tb
    return B


def _build_call(tb, B, input_dim, hidden, enc_dim, out_dtype, compute_dtype,
                stream_buffers, weight_buffers, vmem_limit_bytes):
    """Construct the pallas_call for one configuration."""
    stream_mode = pl.Buffered(stream_buffers) if stream_buffers else None
    weight_mode = pl.Buffered(weight_buffers) if weight_buffers else None

    def resident(shape):
        # Weight / bias blocks: full array, block index pinned to 0 so they are
        # DMA'd once and stay resident; Buffered(1) keeps a single VMEM copy
        # instead of a useless double buffer (VMEM reclaimed for bigger tiles).
        return pl.BlockSpec(shape, lambda i: (0,) * len(shape),
                            pipeline_mode=weight_mode)

    in_specs = [
        pl.BlockSpec((tb, input_dim), lambda i: (i, 0),
                     pipeline_mode=stream_mode),                 # x (streamed)
        resident((input_dim, hidden)), resident((1, hidden)),    # w1, b1
        resident((hidden, enc_dim)),   resident((1, enc_dim)),   # w2, b2
        resident((enc_dim, hidden)),   resident((1, hidden)),    # w3, b3
        resident((hidden, input_dim)), resident((1, input_dim)), # w4, b4
    ]
    out_specs = [
        pl.BlockSpec((tb, input_dim), lambda i: (i, 0),
                     pipeline_mode=stream_mode),                 # decoded (streamed)
        # Encoded is small (enc_dim lanes); kept in natural layout but on the
        # same pipeline depth as decoded so its writeback overlaps compute.
        pl.BlockSpec((tb, enc_dim), lambda i: (i, 0),
                     pipeline_mode=stream_mode),                 # encoded (streamed)
    ]

    grid_spec = pltpu.PrefetchScalarGridSpec(
        num_scalar_prefetch=0,
        grid=(B // tb,),
        in_specs=in_specs,
        out_specs=out_specs,
    )

    out_shape = (
        jax.ShapeDtypeStruct((B, input_dim), out_dtype),
        jax.ShapeDtypeStruct((B, enc_dim), out_dtype),
    )

    c_item = jnp.dtype(compute_dtype).itemsize
    o_item = jnp.dtype(out_dtype).itemsize
    flops = 2 * B * (input_dim * hidden + hidden * enc_dim
                     + enc_dim * hidden + hidden * input_dim)
    weight_bytes = c_item * (2 * input_dim * hidden + 2 * hidden * enc_dim) \
        + 4 * (2 * hidden + enc_dim + input_dim)
    bytes_accessed = (B * input_dim * c_item            # x in
                      + weight_bytes                    # weights + biases
                      + B * input_dim * o_item          # decoded out
                      + B * enc_dim * o_item)           # encoded out
    cost = pl.CostEstimate(flops=flops,
                           transcendentals=B * input_dim,   # sigmoid exp
                           bytes_accessed=bytes_accessed)

    return pl.pallas_call(
        cdae_kernel,
        grid_spec=grid_spec,
        out_shape=out_shape,
        compiler_params=pltpu.CompilerParams(
            dimension_semantics=("parallel",),
            vmem_limit_bytes=vmem_limit_bytes,
        ),
        cost_estimate=cost,
    )


def cdae_forward(x, params, *, batch_tile=None, compute_dtype=jnp.bfloat16,
                 out_dtype=None, stream_buffers=2, weight_buffers=1):
    """Fused CDAE forward.  Returns (decoded, encoded).

    Outputs default to the compute dtype (bf16): the decoded writeback is the
    dominant HBM stream on this mem-bound kernel, so halving it is the cheapest
    bandwidth win.  Pass out_dtype=jnp.float32 (and compute_dtype=jnp.float32
    for long-K layers) when full precision is needed downstream.
    """
    (w1, b1), (w2, b2), (w3, b3), (w4, b4) = params
    B, input_dim = x.shape
    hidden = w1.shape[1]
    enc_dim = w2.shape[1]
    cdt = jnp.dtype(x.dtype if compute_dtype is None else compute_dtype)
    odt = jnp.dtype(cdt if out_dtype is None else out_dtype)
    c_item, o_item = cdt.itemsize, odt.itemsize

    # ---- VMEM accounting drives tile size, buffer depth and vmem_limit. ----
    capacity = _vmem_capacity_bytes()
    w_bufs = weight_buffers if weight_buffers else 2
    s_bufs = stream_buffers if stream_buffers else 2
    weight_bytes = w_bufs * c_item * (2 * input_dim * hidden + 2 * hidden * enc_dim)
    bias_bytes = w_bufs * 4 * (2 * hidden + enc_dim + input_dim)   # biases stay f32
    # Streamed VMEM per batch row, counting every pipeline buffer.
    row_bytes = (s_bufs * input_dim * c_item        # x in
                 + s_bufs * input_dim * o_item      # decoded out
                 + s_bufs * enc_dim * o_item)       # encoded out
    stream_budget = int(0.6 * capacity) - weight_bytes - bias_bytes
    # TODO(synk): if the resident weights alone blow the budget (very large
    # input_dim on v7x's 64 MiB VMEM), add a K/N grid axis over input_dim with
    # an f32 accumulator instead of shrinking the batch tile further.
    stream_budget = max(stream_budget, 4 * 1024 * 1024)

    sublane = 16 if c_item == 2 else 8   # bf16 packs 16 rows per vreg, f32 packs 8
    tb = _pick_batch_tile(B, row_bytes, stream_budget, sublane) \
        if batch_tile is None else batch_tile
    if B % tb != 0:
        raise ValueError(f"batch_tile={tb} must divide batch={B}")
    if tb != B and tb % sublane != 0:
        raise ValueError(f"batch_tile={tb} must be a multiple of {sublane} "
                         f"({cdt.name} sublane packing) unless it equals the "
                         f"full batch {B}")

    need = weight_bytes + bias_bytes + tb * row_bytes
    vmem_limit = int(min(capacity,
                         max(32 * 1024 * 1024, int(1.3 * need) + (2 << 20))))

    # bf16 on the HBM-streamed tensors / weights halves memory traffic; biases
    # stay f32 (tiny) so the bias-add + activations run in f32.
    x_c = x.astype(cdt)
    w1c, w2c, w3c, w4c = (w.astype(cdt) for w in (w1, w2, w3, w4))
    b1f, b2f, b3f, b4f = (b.astype(jnp.float32) for b in (b1, b2, b3, b4))

    call = _build_call(tb, B, input_dim, hidden, enc_dim, odt, cdt,
                       stream_buffers, weight_buffers, vmem_limit)
    return call(x_c, w1c, b1f, w2c, b2f, w3c, b3f, w4c, b4f)


# --------------------------------------------------------------------------- #
# Reference + init (PyTorch-Linear-style).                                     #
# --------------------------------------------------------------------------- #
def init_params(key, input_dim, encoding_dim=32, hidden=64, dtype=jnp.float32):
    """Deterministic init mimicking PyTorch Linear default U[-1/sqrt(fan_in), +]."""
    def linear(k, fan_in, fan_out):
        kw, kb = jax.random.split(k)
        bound = 1.0 / jnp.sqrt(fan_in)
        w = jax.random.uniform(kw, (fan_in, fan_out), dtype, -bound, bound)
        b = jax.random.uniform(kb, (1, fan_out), dtype, -bound, bound)
        return w, b

    k1, k2, k3, k4 = jax.random.split(key, 4)
    return (
        linear(k1, input_dim, hidden),
        linear(k2, hidden, encoding_dim),
        linear(k3, encoding_dim, hidden),
        linear(k4, hidden, input_dim),
    )


def cdae_reference(x, params):
    (w1, b1), (w2, b2), (w3, b3), (w4, b4) = params
    h1 = jnp.maximum(x @ w1 + b1, 0.0)
    enc = jnp.maximum(h1 @ w2 + b2, 0.0)
    h3 = jnp.maximum(enc @ w3 + b3, 0.0)
    dec = jax.nn.sigmoid(h3 @ w4 + b4)
    return dec, enc


if __name__ == "__main__":
    key = jax.random.PRNGKey(0)
    kx, kp = jax.random.split(key)

    B, input_dim, encoding_dim = 256, 128, 32   # tile picker -> tb=64, grid=(4,)
    x = jax.random.uniform(kx, (B, input_dim), jnp.float32)
    params = init_params(kp, input_dim, encoding_dim)

    try:
        # Default path: bf16 streams/outputs, Buffered(2) streamed tiles,
        # Buffered(1) resident weights, >=4 grid steps.
        decoded, encoded = cdae_forward(x, params)
    except Exception:
        # Conservative fallback: default pipelining depths, f32 everywhere.
        decoded, encoded = cdae_forward(x, params, compute_dtype=jnp.float32,
                                        out_dtype=jnp.float32,
                                        stream_buffers=None, weight_buffers=None)
    jax.block_until_ready((decoded, encoded))

    dec_ref, enc_ref = cdae_reference(x, params)        # f32 reference
    assert decoded.shape == (B, input_dim) and encoded.shape == (B, encoding_dim)
    # bf16 weights/activations/outputs -> loosened tolerances vs f32 reference.
    assert jnp.allclose(decoded.astype(jnp.float32), dec_ref, atol=3e-2, rtol=3e-2)
    assert jnp.allclose(encoded.astype(jnp.float32), enc_ref, atol=3e-2, rtol=3e-2)

    print("KERNEL_OK")
</pallas_src>

<mosaic_0001>
module attributes {stable_mosaic.version = 11 : i64} {
  func.func @cdae_kernel(%arg0: i32, %arg1: memref<64x128xbf16, #tpu.memory_space<vmem>>, %arg2: memref<128x64xbf16, #tpu.memory_space<vmem>>, %arg3: memref<1x64xf32, #tpu.memory_space<vmem>>, %arg4: memref<64x32xbf16, #tpu.memory_space<vmem>>, %arg5: memref<1x32xf32, #tpu.memory_space<vmem>>, %arg6: memref<32x64xbf16, #tpu.memory_space<vmem>>, %arg7: memref<1x64xf32, #tpu.memory_space<vmem>>, %arg8: memref<64x128xbf16, #tpu.memory_space<vmem>>, %arg9: memref<1x128xf32, #tpu.memory_space<vmem>>, %arg10: memref<64x128xbf16, #tpu.memory_space<vmem>>, %arg11: memref<64x32xbf16, #tpu.memory_space<vmem>>) attributes {dimension_semantics = [#tpu.dimension_semantics<parallel>], iteration_bounds = array<i64: 4>, scalar_prefetch = 0 : i64, scratch_operands = 0 : i64, tpu.core_type = #tpu.core_type<tc>, window_params = [{pipeline_mode = #tpu.pipeline_mode<double_buffered>, transform_indices = @transform_0, window_bounds = array<i64: 64, 128>}, {pipeline_mode = #tpu.pipeline_mode<synchronous>, transform_indices = @transform_1, window_bounds = array<i64: 128, 64>}, {pipeline_mode = #tpu.pipeline_mode<synchronous>, transform_indices = @transform_2, window_bounds = array<i64: 1, 64>}, {pipeline_mode = #tpu.pipeline_mode<synchronous>, transform_indices = @transform_3, window_bounds = array<i64: 64, 32>}, {pipeline_mode = #tpu.pipeline_mode<synchronous>, transform_indices = @transform_4, window_bounds = array<i64: 1, 32>}, {pipeline_mode = #tpu.pipeline_mode<synchronous>, transform_indices = @transform_5, window_bounds = array<i64: 32, 64>}, {pipeline_mode = #tpu.pipeline_mode<synchronous>, transform_indices = @transform_6, window_bounds = array<i64: 1, 64>}, {pipeline_mode = #tpu.pipeline_mode<synchronous>, transform_indices = @transform_7, window_bounds = array<i64: 64, 128>}, {pipeline_mode = #tpu.pipeline_mode<synchronous>, transform_indices = @transform_8, window_bounds = array<i64: 1, 128>}, {pipeline_mode = #tpu.pipeline_mode<double_buffered>, transform_indices = @transform_9, window_bounds = array<i64: 64, 128>}, {pipeline_mode = #tpu.pipeline_mode<double_buffered>, transform_indices = @transform_10, window_bounds = array<i64: 64, 32>}]} {
    %c0 = arith.constant 0 : index
    %c0_0 = arith.constant 0 : index
    %0 = vector.load %arg1[%c0, %c0_0] : memref<64x128xbf16, #tpu.memory_space<vmem>>, vector<64x128xbf16>
    %c0_1 = arith.constant 0 : index
    %c0_2 = arith.constant 0 : index
    %1 = vector.load %arg2[%c0_1, %c0_2] : memref<128x64xbf16, #tpu.memory_space<vmem>>, vector<128x64xbf16>
    %cst = arith.constant dense<0.000000e+00> : vector<64x64xf32>
    %2 = tpu.matmul %0, %1, %cst {dimension_numbers = #tpu.dot_dimension_numbers<[1], [0], [0], [1], [0, 0, 1, 1], [], []>} : vector<64x128xbf16>, vector<128x64xbf16>, vector<64x64xf32> -> vector<64x64xf32>
    %c0_3 = arith.constant 0 : index
    %c0_4 = arith.constant 0 : index
    %3 = vector.load %arg3[%c0_3, %c0_4] : memref<1x64xf32, #tpu.memory_space<vmem>>, vector<1x64xf32>
    %4 = vector.broadcast %3 : vector<1x64xf32> to vector<64x64xf32>
    %5 = arith.addf %2, %4 : vector<64x64xf32>
    %cst_5 = arith.constant 0.000000e+00 : f32
    %6 = vector.broadcast %cst_5 : f32 to vector<64x64xf32>
    %7 = arith.maximumf %5, %6 : vector<64x64xf32>
    %8 = arith.truncf %7 : vector<64x64xf32> to vector<64x64xbf16>
    %c0_6 = arith.constant 0 : index
    %c0_7 = arith.constant 0 : index
    %9 = vector.load %arg4[%c0_6, %c0_7] : memref<64x32xbf16, #tpu.memory_space<vmem>>, vector<64x32xbf16>
    %cst_8 = arith.constant dense<0.000000e+00> : vector<64x32xf32>
    %10 = tpu.matmul %8, %9, %cst_8 {dimension_numbers = #tpu.dot_dimension_numbers<[1], [0], [0], [1], [0, 0, 1, 1], [], []>} : vector<64x64xbf16>, vector<64x32xbf16>, vector<64x32xf32> -> vector<64x32xf32>
    %c0_9 = arith.constant 0 : index
    %c0_10 = arith.constant 0 : index
    %11 = vector.load %arg5[%c0_9, %c0_10] : memref<1x32xf32, #tpu.memory_space<vmem>>, vector<1x32xf32>
    %12 = vector.broadcast %11 : vector<1x32xf32> to vector<64x32xf32>
    %13 = arith.addf %10, %12 : vector<64x32xf32>
    %cst_11 = arith.constant 0.000000e+00 : f32
    %14 = vector.broadcast %cst_11 : f32 to vector<64x32xf32>
    %15 = arith.maximumf %13, %14 : vector<64x32xf32>
    %16 = arith.truncf %15 : vector<64x32xf32> to vector<64x32xbf16>
    %c0_12 = arith.constant 0 : index
    %c0_13 = arith.constant 0 : index
    %17 = vector.load %arg6[%c0_12, %c0_13] : memref<32x64xbf16, #tpu.memory_space<vmem>>, vector<32x64xbf16>
    %cst_14 = arith.constant dense<0.000000e+00> : vector<64x64xf32>
    %18 = tpu.matmul %16, %17, %cst_14 {dimension_numbers = #tpu.dot_dimension_numbers<[1], [0], [0], [1], [0, 0, 1, 1], [], []>} : vector<64x32xbf16>, vector<32x64xbf16>, vector<64x64xf32> -> vector<64x64xf32>
    %c0_15 = arith.constant 0 : index
    %c0_16 = arith.constant 0 : index
    %19 = vector.load %arg7[%c0_15, %c0_16] : memref<1x64xf32, #tpu.memory_space<vmem>>, vector<1x64xf32>
    %20 = vector.broadcast %19 : vector<1x64xf32> to vector<64x64xf32>
    %21 = arith.addf %18, %20 : vector<64x64xf32>
    %cst_17 = arith.constant 0.000000e+00 : f32
    %22 = vector.broadcast %cst_17 : f32 to vector<64x64xf32>
    %23 = arith.maximumf %21, %22 : vector<64x64xf32>
    %24 = arith.truncf %23 : vector<64x64xf32> to vector<64x64xbf16>
    %c0_18 = arith.constant 0 : index
    %c0_19 = arith.constant 0 : index
    %25 = vector.load %arg8[%c0_18, %c0_19] : memref<64x128xbf16, #tpu.memory_space<vmem>>, vector<64x128xbf16>
    %cst_20 = arith.constant dense<0.000000e+00> : vector<64x128xf32>
    %26 = tpu.matmul %24, %25, %cst_20 {dimension_numbers = #tpu.dot_dimension_numbers<[1], [0], [0], [1], [0, 0, 1, 1], [], []>} : vector<64x64xbf16>, vector<64x128xbf16>, vector<64x128xf32> -> vector<64x128xf32>
    %c0_21 = arith.constant 0 : index
    %c0_22 = arith.constant 0 : index
    %27 = vector.load %arg9[%c0_21, %c0_22] : memref<1x128xf32, #tpu.memory_space<vmem>>, vector<1x128xf32>
    %28 = vector.broadcast %27 : vector<1x128xf32> to vector<64x128xf32>
    %29 = arith.addf %26, %28 : vector<64x128xf32>
    %cst_23 = arith.constant 0.000000e+00 : f32
    %30 = vector.broadcast %cst_23 : f32 to vector<64x128xf32>
    %31 = arith.subf %30, %29 : vector<64x128xf32>
    %32 = math.exp %31 : vector<64x128xf32>
    %cst_24 = arith.constant 1.000000e+00 : f32
    %33 = vector.broadcast %cst_24 : f32 to vector<64x128xf32>
    %34 = arith.addf %33, %32 : vector<64x128xf32>
    %35 = tpu.reciprocal %34 {approx = true} : vector<64x128xf32> -> vector<64x128xf32>
    %36 = arith.truncf %35 : vector<64x128xf32> to vector<64x128xbf16>
    %c0_25 = arith.constant 0 : index
    %c0_26 = arith.constant 0 : index
    %37 = vector.load %arg10[%c0_25, %c0_26] : memref<64x128xbf16, #tpu.memory_space<vmem>>, vector<64x128xbf16>
    tpu.vector_store %arg10[%c0_25, %c0_26], %36 {strides = array<i32>} : memref<64x128xbf16, #tpu.memory_space<vmem>>, vector<64x128xbf16>,
    %38 = arith.truncf %15 : vector<64x32xf32> to vector<64x32xbf16>
    %c0_27 = arith.constant 0 : index
    %c0_28 = arith.constant 0 : index
    %39 = vector.load %arg11[%c0_27, %c0_28] : memref<64x32xbf16, #tpu.memory_space<vmem>>, vector<64x32xbf16>
    tpu.vector_store %arg11[%c0_27, %c0_28], %38 {strides = array<i32>} : memref<64x32xbf16, #tpu.memory_space<vmem>>, vector<64x32xbf16>,
    return
  }
  func.func @transform_0(%arg0: i32) -> (i32, i32) {
    %c0_i32 = arith.constant 0 : i32
    %c0_i32_0 = arith.constant 0 : i32
    return %arg0, %c0_i32 : i32, i32
  }
  func.func @transform_1(%arg0: i32) -> (i32, i32) {
    %c0_i32 = arith.constant 0 : i32
    %c0_i32_0 = arith.constant 0 : i32
    %c0_i32_1 = arith.constant 0 : i32
    return %c0_i32, %c0_i32_0 : i32, i32
  }
  func.func @transform_2(%arg0: i32) -> (i32, i32) {
    %c0_i32 = arith.constant 0 : i32
    %c0_i32_0 = arith.constant 0 : i32
    %c0_i32_1 = arith.constant 0 : i32
    return %c0_i32, %c0_i32_0 : i32, i32
  }
  func.func @transform_3(%arg0: i32) -> (i32, i32) {
    %c0_i32 = arith.constant 0 : i32
    %c0_i32_0 = arith.constant 0 : i32
    %c0_i32_1 = arith.constant 0 : i32
    return %c0_i32, %c0_i32_0 : i32, i32
  }
  func.func @transform_4(%arg0: i32) -> (i32, i32) {
    %c0_i32 = arith.constant 0 : i32
    %c0_i32_0 = arith.constant 0 : i32
    %c0_i32_1 = arith.constant 0 : i32
    return %c0_i32, %c0_i32_0 : i32, i32
  }
  func.func @transform_5(%arg0: i32) -> (i32, i32) {
    %c0_i32 = arith.constant 0 : i32
    %c0_i32_0 = arith.constant 0 : i32
    %c0_i32_1 = arith.constant 0 : i32
    return %c0_i32, %c0_i32_0 : i32, i32
  }
  func.func @transform_6(%arg0: i32) -> (i32, i32) {
    %c0_i32 = arith.constant 0 : i32
    %c0_i32_0 = arith.constant 0 : i32
    %c0_i32_1 = arith.constant 0 : i32
    return %c0_i32, %c0_i32_0 : i32, i32
  }
  func.func @transform_7(%arg0: i32) -> (i32, i32) {
    %c0_i32 = arith.constant 0 : i32
    %c0_i32_0 = arith.constant 0 : i32
    %c0_i32_1 = arith.constant 0 : i32
    return %c0_i32, %c0_i32_0 : i32, i32
  }
  func.func @transform_8(%arg0: i32) -> (i32, i32) {
    %c0_i32 = arith.constant 0 : i32
    %c0_i32_0 = arith.constant 0 : i32
    %c0_i32_1 = arith.constant 0 : i32
    return %c0_i32, %c0_i32_0 : i32, i32
  }
  func.func @transform_9(%arg0: i32) -> (i32, i32) {
    %c0_i32 = arith.constant 0 : i32
    %c0_i32_0 = arith.constant 0 : i32
    return %arg0, %c0_i32 : i32, i32
  }
  func.func @transform_10(%arg0: i32) -> (i32, i32) {
    %c0_i32 = arith.constant 0 : i32
    %c0_i32_0 = arith.constant 0 : i32
    return %arg0, %c0_i32 : i32, i32
  }
}

module attributes {stable_mosaic.version = 11 : i64} {
  func.func @cdae_kernel(%arg0: i32, %arg1: memref<64x128xf32, #tpu.memory_space<vmem>>, %arg2: memref<128x64xf32, #tpu.memory_space<vmem>>, %arg3: memref<1x64xf32, #tpu.memory_space<vmem>>, %arg4: memref<64x32xf32, #tpu.memory_space<vmem>>, %arg5: memref<1x32xf32, #tpu.memory_space<vmem>>, %arg6: memref<32x64xf32, #tpu.memory_space<vmem>>, %arg7: memref<1x64xf32, #tpu.memory_space<vmem>>, %arg8: memref<64x128xf32, #tpu.memory_space<vmem>>, %arg9: memref<1x128xf32, #tpu.memory_space<vmem>>, %arg10: memref<64x128xf32, #tpu.memory_space<vmem>>, %arg11: memref<64x32xf32, #tpu.memory_space<vmem>>) attributes {dimension_semantics = [#tpu.dimension_semantics<parallel>], iteration_bounds = array<i64: 4>, scalar_prefetch = 0 : i64, scratch_operands = 0 : i64, tpu.core_type = #tpu.core_type<tc>, window_params = [{transform_indices = @transform_0, window_bounds = array<i64: 64, 128>}, {pipeline_mode = #tpu.pipeline_mode<synchronous>, transform_indices = @transform_1, window_bounds = array<i64: 128, 64>}, {pipeline_mode = #tpu.pipeline_mode<synchronous>, transform_indices = @transform_2, window_bounds = array<i64: 1, 64>}, {pipeline_mode = #tpu.pipeline_mode<synchronous>, transform_indices = @transform_3, window_bounds = array<i64: 64, 32>}, {pipeline_mode = #tpu.pipeline_mode<synchronous>, transform_indices = @transform_4, window_bounds = array<i64: 1, 32>}, {pipeline_mode = #tpu.pipeline_mode<synchronous>, transform_indices = @transform_5, window_bounds = array<i64: 32, 64>}, {pipeline_mode = #tpu.pipeline_mode<synchronous>, transform_indices = @transform_6, window_bounds = array<i64: 1, 64>}, {pipeline_mode = #tpu.pipeline_mode<synchronous>, transform_indices = @transform_7, window_bounds = array<i64: 64, 128>}, {pipeline_mode = #tpu.pipeline_mode<synchronous>, transform_indices = @transform_8, window_bounds = array<i64: 1, 128>}, {transform_indices = @transform_9, window_bounds = array<i64: 64, 128>}, {transform_indices = @transform_10, window_bounds = array<i64: 64, 32>}]} {
    %c0 = arith.constant 0 : index
    %c0_0 = arith.constant 0 : index
    %0 = vector.load %arg1[%c0, %c0_0] : memref<64x128xf32, #tpu.memory_space<vmem>>, vector<64x128xf32>
    %c0_1 = arith.constant 0 : index
    %c0_2 = arith.constant 0 : index
    %1 = vector.load %arg2[%c0_1, %c0_2] : memref<128x64xf32, #tpu.memory_space<vmem>>, vector<128x64xf32>
    %cst = arith.constant dense<0.000000e+00> : vector<64x64xf32>
    %2 = tpu.matmul %0, %1, %cst {dimension_numbers = #tpu.dot_dimension_numbers<[1], [0], [0], [1], [0, 0, 1, 1], [], []>} : vector<64x128xf32>, vector<128x64xf32>, vector<64x64xf32> -> vector<64x64xf32>
    %c0_3 = arith.constant 0 : index
    %c0_4 = arith.constant 0 : index
    %3 = vector.load %arg3[%c0_3, %c0_4] : memref<1x64xf32, #tpu.memory_space<vmem>>, vector<1x64xf32>
    %4 = vector.broadcast %3 : vector<1x64xf32> to vector<64x64xf32>
    %5 = arith.addf %2, %4 : vector<64x64xf32>
    %cst_5 = arith.constant 0.000000e+00 : f32
    %6 = vector.broadcast %cst_5 : f32 to vector<64x64xf32>
    %7 = arith.maximumf %5, %6 : vector<64x64xf32>
    %c0_6 = arith.constant 0 : index
    %c0_7 = arith.constant 0 : index
    %8 = vector.load %arg4[%c0_6, %c0_7] : memref<64x32xf32, #tpu.memory_space<vmem>>, vector<64x32xf32>
    %cst_8 = arith.constant dense<0.000000e+00> : vector<64x32xf32>
    %9 = tpu.matmul %7, %8, %cst_8 {dimension_numbers = #tpu.dot_dimension_numbers<[1], [0], [0], [1], [0, 0, 1, 1], [], []>} : vector<64x64xf32>, vector<64x32xf32>, vector<64x32xf32> -> vector<64x32xf32>
    %c0_9 = arith.constant 0 : index
    %c0_10 = arith.constant 0 : index
    %10 = vector.load %arg5[%c0_9, %c0_10] : memref<1x32xf32, #tpu.memory_space<vmem>>, vector<1x32xf32>
    %11 = vector.broadcast %10 : vector<1x32xf32> to vector<64x32xf32>
    %12 = arith.addf %9, %11 : vector<64x32xf32>
    %cst_11 = arith.constant 0.000000e+00 : f32
    %13 = vector.broadcast %cst_11 : f32 to vector<64x32xf32>
    %14 = arith.maximumf %12, %13 : vector<64x32xf32>
    %c0_12 = arith.constant 0 : index
    %c0_13 = arith.constant 0 : index
    %15 = vector.load %arg6[%c0_12, %c0_13] : memref<32x64xf32, #tpu.memory_space<vmem>>, vector<32x64xf32>
    %cst_14 = arith.constant dense<0.000000e+00> : vector<64x64xf32>
    %16 = tpu.matmul %14, %15, %cst_14 {dimension_numbers = #tpu.dot_dimension_numbers<[1], [0], [0], [1], [0, 0, 1, 1], [], []>} : vector<64x32xf32>, vector<32x64xf32>, vector<64x64xf32> -> vector<64x64xf32>
    %c0_15 = arith.constant 0 : index
    %c0_16 = arith.constant 0 : index
    %17 = vector.load %arg7[%c0_15, %c0_16] : memref<1x64xf32, #tpu.memory_space<vmem>>, vector<1x64xf32>
    %18 = vector.broadcast %17 : vector<1x64xf32> to vector<64x64xf32>
    %19 = arith.addf %16, %18 : vector<64x64xf32>
    %cst_17 = arith.constant 0.000000e+00 : f32
    %20 = vector.broadcast %cst_17 : f32 to vector<64x64xf32>
    %21 = arith.maximumf %19, %20 : vector<64x64xf32>
    %c0_18 = arith.constant 0 : index
    %c0_19 = arith.constant 0 : index
    %22 = vector.load %arg8[%c0_18, %c0_19] : memref<64x128xf32, #tpu.memory_space<vmem>>, vector<64x128xf32>
    %cst_20 = arith.constant dense<0.000000e+00> : vector<64x128xf32>
    %23 = tpu.matmul %21, %22, %cst_20 {dimension_numbers = #tpu.dot_dimension_numbers<[1], [0], [0], [1], [0, 0, 1, 1], [], []>} : vector<64x64xf32>, vector<64x128xf32>, vector<64x128xf32> -> vector<64x128xf32>
    %c0_21 = arith.constant 0 : index
    %c0_22 = arith.constant 0 : index
    %24 = vector.load %arg9[%c0_21, %c0_22] : memref<1x128xf32, #tpu.memory_space<vmem>>, vector<1x128xf32>
    %25 = vector.broadcast %24 : vector<1x128xf32> to vector<64x128xf32>
    %26 = arith.addf %23, %25 : vector<64x128xf32>
    %cst_23 = arith.constant 0.000000e+00 : f32
    %27 = vector.broadcast %cst_23 : f32 to vector<64x128xf32>
    %28 = arith.subf %27, %26 : vector<64x128xf32>
    %29 = math.exp %28 : vector<64x128xf32>
    %cst_24 = arith.constant 1.000000e+00 : f32
    %30 = vector.broadcast %cst_24 : f32 to vector<64x128xf32>
    %31 = arith.addf %30, %29 : vector<64x128xf32>
    %32 = tpu.reciprocal %31 {approx = true} : vector<64x128xf32> -> vector<64x128xf32>
    %c0_25 = arith.constant 0 : index
    %c0_26 = arith.constant 0 : index
    %33 = vector.load %arg10[%c0_25, %c0_26] : memref<64x128xf32, #tpu.memory_space<vmem>>, vector<64x128xf32>
    tpu.vector_store %arg10[%c0_25, %c0_26], %32 {strides = array<i32>} : memref<64x128xf32, #tpu.memory_space<vmem>>, vector<64x128xf32>,
    %c0_27 = arith.constant 0 : index
    %c0_28 = arith.constant 0 : index
    %34 = vector.load %arg11[%c0_27, %c0_28] : memref<64x32xf32, #tpu.memory_space<vmem>>, vector<64x32xf32>
    tpu.vector_store %arg11[%c0_27, %c0_28], %14 {strides = array<i32>} : memref<64x32xf32, #tpu.memory_space<vmem>>, vector<64x32xf32>,
    return
  }
  func.func @transform_0(%arg0: i32) -> (i32, i32) {
    %c0_i32 = arith.constant 0 : i32
    %c0_i32_0 = arith.constant 0 : i32
    return %arg0, %c0_i32 : i32, i32
  }
  func.func @transform_1(%arg0: i32) -> (i32, i32) {
    %c0_i32 = arith.constant 0 : i32
    %c0_i32_0 = arith.constant 0 : i32
    %c0_i32_1 = arith.constant 0 : i32
    return %c0_i32, %c0_i32_0 : i32, i32
  }
  func.func @transform_2(%arg0: i32) -> (i32, i32) {
    %c0_i32 = arith.constant 0 : i32
    %c0_i32_0 = arith.constant 0 : i32
    %c0_i32_1 = arith.constant 0 : i32
    return %c0_i32, %c0_i32_0 : i32, i32
  }
  func.func @transform_3(%arg0: i32) -> (i32, i32) {
    %c0_i32 = arith.constant 0 : i32
    %c0_i32_0 = arith.constant 0 : i32
    %c0_i32_1 = arith.constant 0 : i32
    return %c0_i32, %c0_i32_0 : i32, i32
  }
  func.func @transform_4(%arg0: i32) -> (i32, i32) {
    %c0_i32 = arith.constant 0 : i32
    %c0_i32_0 = arith.constant 0 : i32
    %c0_i32_1 = arith.constant 0 : i32
    return %c0_i32, %c0_i32_0 : i32, i32
  }
  func.func @transform_5(%arg0: i32) -> (i32, i32) {
    %c0_i32 = arith.constant 0 : i32
    %c0_i32_0 = arith.constant 0 : i32
    %c0_i32_1 = arith.constant 0 : i32
    return %c0_i32, %c0_i32_0 : i32, i32
  }
  func.func @transform_6(%arg0: i32) -> (i32, i32) {
    %c0_i32 = arith.constant 0 : i32
    %c0_i32_0 = arith.constant 0 : i32
    %c0_i32_1 = arith.constant 0 : i32
    return %c0_i32, %c0_i32_0 : i32, i32
  }
  func.func @transform_7(%arg0: i32) -> (i32, i32) {
    %c0_i32 = arith.constant 0 : i32
    %c0_i32_0 = arith.constant 0 : i32
    %c0_i32_1 = arith.constant 0 : i32
    return %c0_i32, %c0_i32_0 : i32, i32
  }
  func.func @transform_8(%arg0: i32) -> (i32, i32) {
    %c0_i32 = arith.constant 0 : i32
    %c0_i32_0 = arith.constant 0 : i32
    %c0_i32_1 = arith.constant 0 : i32
    return %c0_i32, %c0_i32_0 : i32, i32
  }
  func.func @transform_9(%arg0: i32) -> (i32, i32) {
    %c0_i32 = arith.constant 0 : i32
    %c0_i32_0 = arith.constant 0 : i32
    return %arg0, %c0_i32 : i32, i32
  }
  func.func @transform_10(%arg0: i32) -> (i32, i32) {
    %c0_i32 = arith.constant 0 : i32
    %c0_i32_0 = arith.constant 0 : i32
    return %arg0, %c0_i32 : i32, i32
  }
}

</mosaic_0001>

<llo_original>
// kernel: tpu_custom_call.1
$region0: #{tpu_custom_call.1}
  #allocation0 [shape = 'u32[]', space=smem, size = 0x4, offset = 0x4, fixed_abs, tag = 'smem constant byte address 0x4 - core index']
  #allocation1 [shape = 'u32[144,128]{1,0:T(1,128)}', space=vmem, size = 0x12000, scoped, tag = 'internal scratch']
  %s0 = inlined_call_operand.vmem [shape: bf16[256,128], index: 0, kind: input, shape index: {}]
  %s1 = inlined_call_operand.vmem [shape: bf16[128,64], index: 1, kind: input, shape index: {}]
  %s2 = inlined_call_operand.vmem [shape: f32[1,64], index: 2, kind: input, shape index: {}]
  %s3 = inlined_call_operand.vmem [shape: bf16[64,32], index: 3, kind: input, shape index: {}]
  %s4 = inlined_call_operand.vmem [shape: f32[1,32], index: 4, kind: input, shape index: {}]
  %s5 = inlined_call_operand.vmem [shape: bf16[32,64], index: 5, kind: input, shape index: {}]
  %s6 = inlined_call_operand.vmem [shape: f32[1,64], index: 6, kind: input, shape index: {}]
  %s7 = inlined_call_operand.hbm [shape: bf16[64,128], index: 7, kind: input, shape index: {}]
  %s8 = inlined_call_operand.vmem [shape: f32[1,128], index: 8, kind: input, shape index: {}]
  %s9 = inlined_call_operand.hbm [shape: bf16[256,128], index: 9, kind: output, shape index: {0}]
  %s10 = inlined_call_operand.vmem [shape: bf16[256,32], index: 10, kind: output, shape index: {1}]
  %11 = xla_tuple %s9, %s10
  %s12 = sld [smem:[#allocation0]]
  $region81: #{tpu_custom_call.1} parent=0
    _
  %s14 = ssub.s32 1, %s12
  %s15 = scalar_select 0, %s14, %s12
  $region1: #{tpu_custom_call.1} parent=0
    #allocation2 [shape = 'u8[16384]{0}', space=vmem, size = 0x4000, scoped, tag = 'input window, operand 7, single buffered']
    #allocation3 [shape = 's32[2]{0}', space=sflag, size = 0x8, scoped, tag = 'scoped memory for tpu_custom_call.1']
    #allocation4 [shape = 's32[2]{0}', space=sflag, size = 0x8, scoped, tag = 'scoped memory for tpu_custom_call.1']
    #allocation5 [shape = 'u8[32768]{0}', space=vmem, size = 0x8000, scoped, tag = 'output window, operand 0']
    %16 = vsyncpa [#allocation3], 0
    %17 = vsyncpa [#allocation4], 0
    %s18 = scalar_lea.sflag [#allocation4], 1
    %19 = vsyncpa %s18, 0
    loop: start=0, step=1, limit=6
    $region2: #{tpu_custom_call.1} parent=1 // loop_pre_header
      _
    $region3: #{tpu_custom_call.1} parent=1 // loop_header
      %s21 = sphi 0, %s25
      %p22 = scmp.ge.s32.totalorder %s21, 6
      %s31 = sphi 0, %s33
      %s34 = sphi 0, %s31
      %s35 = sphi 0, %s34
      %s51 = sphi 0, %s35
      %s55 = sphi 0, %s55
      %s57 = sphi 0, %s55
      %s58 = sphi 0, %s57
      %s72 = sphi 0, %s58
      %s76 = sphi 0, %s76
      %s78 = sphi 0, %s76
      %s79 = sphi 0, %s78
      %s93 = sphi 0, %s79
      %s97 = sphi 0, %s97
      %s99 = sphi 0, %s97
      %s100 = sphi 0, %s99
      %s114 = sphi 0, %s100
      %s118 = sphi 0, %s118
      %s120 = sphi 0, %s118
      %s121 = sphi 0, %s120
      %s135 = sphi 0, %s121
      %s139 = sphi 0, %s139
      %s141 = sphi 0, %s139
      %s142 = sphi 0, %s141
      %s156 = sphi 0, %s142
      %s160 = sphi 0, %s160
      %s162 = sphi 0, %s160
      %s163 = sphi 0, %s162
      %s177 = sphi 0, %s163
      %s181 = sphi 0, %s181
      %s183 = sphi 0, %s181
      %s184 = sphi 0, %s183
      %s198 = sphi 0, %s184
      %s202 = sphi 0, %s202
      %s204 = sphi 0, %s202
      %s205 = sphi 0, %s204
      %s219 = sphi 0, %s205
      %s225 = sphi 0, %s227
      %s228 = sphi 0, %s225
      %s229 = sphi 0, %s228
      %s245 = sphi 0, %s229
      %s251 = sphi 0, %s253
      %s254 = sphi 0, %s251
      %s255 = sphi 0, %s254
      %s271 = sphi 0, %s255
    $region4: #{tpu_custom_call.1} parent=1 // loop_header_branch
      %24 = sbr.rel (%p22) target = $region8
    $region5: #{tpu_custom_call.1} parent=1 // loop_body
      %s26 = ssub.s32 %s21, 1
      %s27 = ssub.s32 %s21, 2
      %s28 = sadd.s32 %s21, 1
      %s29 = ssub.s32 %s21, %s28
      %p30 = scmp.eq.s32.totalorder %s29, 0
      %s32 = sadd.s32 %s31, 1
      %s33 = scalar_select %p30, %s31, %s32
      %p36 = pneg %p30
      %p37 = scmp.eq.s32.totalorder %s21, 3
      %p38 = por %p36, %p37
      %p39 = scmp.ne.s32.totalorder %s31, %s34
      %p40 = scmp.eq.s32.totalorder %s21, 0
      %p41 = por %p39, %p40
      %p42 = scmp.ne.s32.totalorder %s31, %s34
      %p43 = scmp.eq.s32.totalorder %s26, 3
      %p44 = por %p42, %p43
      %p45 = scmp.ne.s32.totalorder %s34, %s35
      %p46 = scmp.eq.s32.totalorder %s26, 0
      %p47 = por %p45, %p46
      %p48 = scmp.ne.s32.totalorder %s34, %s35
      %p49 = scmp.eq.s32.totalorder %s27, 3
      %p50 = por %p48, %p49
      %p52 = scmp.ne.s32.totalorder %s35, %s51
      %p53 = scmp.eq.s32.totalorder %s27, 0
      %p54 = por %p52, %p53
      %s56 = sadd.s32 %s55, 1
      %p59 = scmp.eq.s32.totalorder %s21, 3
      %p60 = scmp.ne.s32.totalorder %s55, %s57
      %p61 = scmp.eq.s32.totalorder %s21, 0
      %p62 = por %p60, %p61
      %p63 = scmp.ne.s32.totalorder %s55, %s57
      %p64 = scmp.eq.s32.totalorder %s26, 3
      %p65 = por %p63, %p64
      %p66 = scmp.ne.s32.totalorder %s57, %s58
      %p67 = scmp.eq.s32.totalorder %s26, 0
      %p68 = por %p66, %p67
      %p69 = scmp.ne.s32.totalorder %s57, %s58
      %p70 = scmp.eq.s32.totalorder %s27, 3
      %p71 = por %p69, %p70
      %p73 = scmp.ne.s32.totalorder %s58, %s72
      %p74 = scmp.eq.s32.totalorder %s27, 0
      %p75 = por %p73, %p74
      %s77 = sadd.s32 %s76, 1
      %p80 = scmp.eq.s32.totalorder %s21, 3
      %p81 = scmp.ne.s32.totalorder %s76, %s78
      %p82 = scmp.eq.s32.totalorder %s21, 0
      %p83 = por %p81, %p82
      %p84 = scmp.ne.s32.totalorder %s76, %s78
      %p85 = scmp.eq.s32.totalorder %s26, 3
      %p86 = por %p84, %p85
      %p87 = scmp.ne.s32.totalorder %s78, %s79
      %p88 = scmp.eq.s32.totalorder %s26, 0
      %p89 = por %p87, %p88
      %p90 = scmp.ne.s32.totalorder %s78, %s79
      %p91 = scmp.eq.s32.totalorder %s27, 3
      %p92 = por %p90, %p91
      %p94 = scmp.ne.s32.totalorder %s79, %s93
      %p95 = scmp.eq.s32.totalorder %s27, 0
      %p96 = por %p94, %p95
      %s98 = sadd.s32 %s97, 1
      %p101 = scmp.eq.s32.totalorder %s21, 3
      %p102 = scmp.ne.s32.totalorder %s97, %s99
      %p103 = scmp.eq.s32.totalorder %s21, 0
      %p104 = por %p102, %p103
      %p105 = scmp.ne.s32.totalorder %s97, %s99
      %p106 = scmp.eq.s32.totalorder %s26, 3
      %p107 = por %p105, %p106
      %p108 = scmp.ne.s32.totalorder %s99, %s100
      %p109 = scmp.eq.s32.totalorder %s26, 0
      %p110 = por %p108, %p109
      %p111 = scmp.ne.s32.totalorder %s99, %s100
      %p112 = scmp.eq.s32.totalorder %s27, 3
      %p113 = por %p111, %p112
      %p115 = scmp.ne.s32.totalorder %s100, %s114
      %p116 = scmp.eq.s32.totalorder %s27, 0
      %p117 = por %p115, %p116
      %s119 = sadd.s32 %s118, 1
      %p122 = scmp.eq.s32.totalorder %s21, 3
      %p123 = scmp.ne.s32.totalorder %s118, %s120
      %p124 = scmp.eq.s32.totalorder %s21, 0
      %p125 = por %p123, %p124
      %p126 = scmp.ne.s32.totalorder %s118, %s120
      %p127 = scmp.eq.s32.totalorder %s26, 3
      %p128 = por %p126, %p127
      %p129 = scmp.ne.s32.totalorder %s120, %s121
      %p130 = scmp.eq.s32.totalorder %s26, 0
      %p131 = por %p129, %p130
      %p132 = scmp.ne.s32.totalorder %s120, %s121
      %p133 = scmp.eq.s32.totalorder %s27, 3
      %p134 = por %p132, %p133
      %p136 = scmp.ne.s32.totalorder %s121, %s135
      %p137 = scmp.eq.s32.totalorder %s27, 0
      %p138 = por %p136, %p137
      %s140 = sadd.s32 %s139, 1
      %p143 = scmp.eq.s32.totalorder %s21, 3
      %p144 = scmp.ne.s32.totalorder %s139, %s141
      %p145 = scmp.eq.s32.totalorder %s21, 0
      %p146 = por %p144, %p145
      %p147 = scmp.ne.s32.totalorder %s139, %s141
      %p148 = scmp.eq.s32.totalorder %s26, 3
      %p149 = por %p147, %p148
      %p150 = scmp.ne.s32.totalorder %s141, %s142
      %p151 = scmp.eq.s32.totalorder %s26, 0
      %p152 = por %p150, %p151
      %p153 = scmp.ne.s32.totalorder %s141, %s142
      %p154 = scmp.eq.s32.totalorder %s27, 3
      %p155 = por %p153, %p154
      %p157 = scmp.ne.s32.totalorder %s142, %s156
      %p158 = scmp.eq.s32.totalorder %s27, 0
      %p159 = por %p157, %p158
      %s161 = sadd.s32 %s160, 1
      %p164 = scmp.eq.s32.totalorder %s21, 3
      %p165 = scmp.ne.s32.totalorder %s160, %s162
      %p166 = scmp.eq.s32.totalorder %s21, 0
      %p167 = por %p165, %p166
      %p168 = scmp.ne.s32.totalorder %s160, %s162
      %p169 = scmp.eq.s32.totalorder %s26, 3
      %p170 = por %p168, %p169
      %p171 = scmp.ne.s32.totalorder %s162, %s163
      %p172 = scmp.eq.s32.totalorder %s26, 0
      %p173 = por %p171, %p172
      %p174 = scmp.ne.s32.totalorder %s162, %s163
      %p175 = scmp.eq.s32.totalorder %s27, 3
      %p176 = por %p174, %p175
      %p178 = scmp.ne.s32.totalorder %s163, %s177
      %p179 = scmp.eq.s32.totalorder %s27, 0
      %p180 = por %p178, %p179
      %s182 = sadd.s32 %s181, 1
      %p185 = scmp.eq.s32.totalorder %s21, 3
      %p186 = scmp.ne.s32.totalorder %s181, %s183
      %p187 = scmp.eq.s32.totalorder %s21, 0
      %p188 = por %p186, %p187
      %p189 = scmp.ne.s32.totalorder %s181, %s183
      %p190 = scmp.eq.s32.totalorder %s26, 3
      %p191 = por %p189, %p190
      %p192 = scmp.ne.s32.totalorder %s183, %s184
      %p193 = scmp.eq.s32.totalorder %s26, 0
      %p194 = por %p192, %p193
      %p195 = scmp.ne.s32.totalorder %s183, %s184
      %p196 = scmp.eq.s32.totalorder %s27, 3
      %p197 = por %p195, %p196
      %p199 = scmp.ne.s32.totalorder %s184, %s198
      %p200 = scmp.eq.s32.totalorder %s27, 0
      %p201 = por %p199, %p200
      %s203 = sadd.s32 %s202, 1
      %p206 = scmp.eq.s32.totalorder %s21, 3
      %p207 = scmp.ne.s32.totalorder %s202, %s204
      %p208 = scmp.eq.s32.totalorder %s21, 0
      %p209 = por %p207, %p208
      %p210 = scmp.ne.s32.totalorder %s202, %s204
      %p211 = scmp.eq.s32.totalorder %s26, 3
      %p212 = por %p210, %p211
      %p213 = scmp.ne.s32.totalorder %s204, %s205
      %p214 = scmp.eq.s32.totalorder %s26, 0
      %p215 = por %p213, %p214
      %p216 = scmp.ne.s32.totalorder %s204, %s205
      %p217 = scmp.eq.s32.totalorder %s27, 3
      %p218 = por %p216, %p217
      %p220 = scmp.ne.s32.totalorder %s205, %s219
      %p221 = scmp.eq.s32.totalorder %s27, 0
      %p222 = por %p220, %p221
      %s223 = ssub.s32 %s21, %s28
      %p224 = scmp.eq.s32.totalorder %s223, 0
      %s226 = sadd.s32 %s225, 1
      %s227 = scalar_select %p224, %s225, %s226
      %p230 = pneg %p224
      %p231 = scmp.eq.s32.totalorder %s21, 3
      %p232 = por %p230, %p231
      %p233 = scmp.ne.s32.totalorder %s225, %s228
      %p234 = scmp.eq.s32.totalorder %s21, 0
      %p235 = por %p233, %p234
      %p236 = scmp.ne.s32.totalorder %s225, %s228
      %p237 = scmp.eq.s32.totalorder %s26, 3
      %p238 = por %p236, %p237
      %p239 = scmp.ne.s32.totalorder %s228, %s229
      %p240 = scmp.eq.s32.totalorder %s26, 0
      %p241 = por %p239, %p240
      %p242 = scmp.ne.s32.totalorder %s228, %s229
      %p243 = scmp.eq.s32.totalorder %s27, 3
      %p244 = por %p242, %p243
      %p246 = scmp.ne.s32.totalorder %s229, %s245
      %p247 = scmp.eq.s32.totalorder %s27, 0
      %p248 = por %p246, %p247
      %s249 = ssub.s32 %s21, %s28
      %p250 = scmp.eq.s32.totalorder %s249, 0
      %s252 = sadd.s32 %s251, 1
      %s253 = scalar_select %p250, %s251, %s252
      %p256 = pneg %p250
      %p257 = scmp.eq.s32.totalorder %s21, 3
      %p258 = por %p256, %p257
      %p259 = scmp.ne.s32.totalorder %s251, %s254
      %p260 = scmp.eq.s32.totalorder %s21, 0
      %p261 = por %p259, %p260
      %p262 = scmp.ne.s32.totalorder %s251, %s254
      %p263 = scmp.eq.s32.totalorder %s26, 3
      %p264 = por %p262, %p263
      %p265 = scmp.ne.s32.totalorder %s254, %s255
      %p266 = scmp.eq.s32.totalorder %s26, 0
      %p267 = por %p265, %p266
      %p268 = scmp.ne.s32.totalorder %s254, %s255
      %p269 = scmp.eq.s32.totalorder %s27, 3
      %p270 = por %p268, %p269
      %p272 = scmp.ne.s32.totalorder %s255, %s271
      %p273 = scmp.eq.s32.totalorder %s27, 0
      %p274 = por %p272, %p273
      %p275 = scmp.le.s32.totalorder 1, %s21
      %p276 = scmp.lt.s32.totalorder %s21, 5
      %p277 = pnand %p275, %p276
      %p278 = pneg %p277
      // Predicated region
      $region9: #{tpu_custom_call.1} parent=5 // pred_check
        _
      $region10: #{tpu_custom_call.1} parent=5 // pred_check_branch
        %280 = sbr.rel (%p277) target = $region12
      $region11: #{tpu_custom_call.1} parent=5 // pred_region
        %s281 = ssub.s32 %s21, 1
        // Predicated region
        $region13: #{tpu_custom_call.1} parent=11 // pred_check
          %p282 = pneg %p68
        $region14: #{tpu_custom_call.1} parent=11 // pred_check_branch
          %284 = sbr.rel (%p282) target = $region16
        $region15: #{tpu_custom_call.1} parent=11 // pred_region
          _
        $region16: #{tpu_custom_call.1} parent=11 // pred_fallthru
          _
        // Predicated region
        $region17: #{tpu_custom_call.1} parent=11 // pred_check
          %p285 = pneg %p89
        $region18: #{tpu_custom_call.1} parent=11 // pred_check_branch
          %287 = sbr.rel (%p285) target = $region20
        $region19: #{tpu_custom_call.1} parent=11 // pred_region
          _
        $region20: #{tpu_custom_call.1} parent=11 // pred_fallthru
          _
        // Predicated region
        $region21: #{tpu_custom_call.1} parent=11 // pred_check
          %p288 = pneg %p110
        $region22: #{tpu_custom_call.1} parent=11 // pred_check_branch
          %290 = sbr.rel (%p288) target = $region24
        $region23: #{tpu_custom_call.1} parent=11 // pred_region
          _
        $region24: #{tpu_custom_call.1} parent=11 // pred_fallthru
          _
        // Predicated region
        $region25: #{tpu_custom_call.1} parent=11 // pred_check
          %p291 = pneg %p131
        $region26: #{tpu_custom_call.1} parent=11 // pred_check_branch
          %293 = sbr.rel (%p291) target = $region28
        $region27: #{tpu_custom_call.1} parent=11 // pred_region
          _
        $region28: #{tpu_custom_call.1} parent=11 // pred_fallthru
          _
        // Predicated region
        $region29: #{tpu_custom_call.1} parent=11 // pred_check
          %p294 = pneg %p152
        $region30: #{tpu_custom_call.1} parent=11 // pred_check_branch
          %296 = sbr.rel (%p294) target = $region32
        $region31: #{tpu_custom_call.1} parent=11 // pred_region
          _
        $region32: #{tpu_custom_call.1} parent=11 // pred_fallthru
          _
        // Predicated region
        $region33: #{tpu_custom_call.1} parent=11 // pred_check
          %p297 = pneg %p173
        $region34: #{tpu_custom_call.1} parent=11 // pred_check_branch
          %299 = sbr.rel (%p297) target = $region36
        $region35: #{tpu_custom_call.1} parent=11 // pred_region
          _
        $region36: #{tpu_custom_call.1} parent=11 // pred_fallthru
          _
        // Predicated region
        $region37: #{tpu_custom_call.1} parent=11 // pred_check
          %p300 = pneg %p194
        $region38: #{tpu_custom_call.1} parent=11 // pred_check_branch
          %302 = sbr.rel (%p300) target = $region40
        $region39: #{tpu_custom_call.1} parent=11 // pred_region
          %s304 = ssub.s32 512, 512
          %305 = vsyncadd [#allocation3], %s304
          %s306 = sshll.u32 [#allocation2], 4
          %s307 = int_to_ptr.vmem [resolvable:$true] %s306
          %312 = dma.hbm_to_vmem [thread:$0]  %s7, 512, %s307, [#allocation3], 64, 64, 4
        $region40: #{tpu_custom_call.1} parent=11 // pred_fallthru
          _
        // Predicated region
        $region41: #{tpu_custom_call.1} parent=11 // pred_check
          %p313 = pneg %p215
        $region42: #{tpu_custom_call.1} parent=11 // pred_check_branch
          %315 = sbr.rel (%p313) target = $region44
        $region43: #{tpu_custom_call.1} parent=11 // pred_region
          _
        $region44: #{tpu_custom_call.1} parent=11 // pred_fallthru
          _
      $region12: #{tpu_custom_call.1} parent=5 // pred_fallthru
        _
      %p316 = scmp.lt.s32.totalorder %s21, 4
      // Predicated region
      $region45: #{tpu_custom_call.1} parent=5 // pred_check
        %p317 = pneg %p316
      $region46: #{tpu_custom_call.1} parent=5 // pred_check_branch
        %319 = sbr.rel (%p317) target = $region48
      $region47: #{tpu_custom_call.1} parent=5 // pred_region
        // Predicated region
        $region49: #{tpu_custom_call.1} parent=47 // pred_check
          %p320 = pneg %p41
        $region50: #{tpu_custom_call.1} parent=47 // pred_check_branch
          %322 = sbr.rel (%p320) target = $region52
        $region51: #{tpu_custom_call.1} parent=47 // pred_region
          %s323 = smul.u32 8, %s21
          %p324 = scmp.lt.s32.totalorder %s323, 31
          %s325 = scalar_select %p324, %s323, 31
          %s326 = smul.addr %s325, 4
          %s327 = scalar_lea.vmem %s0, %s326
          %s328 = smul.u32 8, %s21
        $region52: #{tpu_custom_call.1} parent=47 // pred_fallthru
          _
      $region48: #{tpu_custom_call.1} parent=5 // pred_fallthru
        _
      %p329 = scmp.le.s32.totalorder 1, %s21
      %p330 = scmp.lt.s32.totalorder %s21, 5
      %p331 = pnand %p329, %p330
      %p332 = pneg %p331
      // Predicated region
      $region53: #{tpu_custom_call.1} parent=5 // pred_check
        _
      $region54: #{tpu_custom_call.1} parent=5 // pred_check_branch
        %334 = sbr.rel (%p331) target = $region56
      $region55: #{tpu_custom_call.1} parent=5 // pred_region
        %s335 = ssub.s32 %s21, 1
        // Predicated region
        $region57: #{tpu_custom_call.1} parent=55 // pred_check
          %p336 = pneg %p194
        $region58: #{tpu_custom_call.1} parent=55 // pred_check_branch
          %338 = sbr.rel (%p336) target = $region60
        $region59: #{tpu_custom_call.1} parent=55 // pred_region
          %339 = dma.done [#allocation3], 512
        $region60: #{tpu_custom_call.1} parent=55 // pred_fallthru
          _
        %s340 = smul.u32 8, %s26
        %p341 = scmp.lt.s32.totalorder %s340, 31
        %s342 = scalar_select %p341, %s340, 31
        %s343 = smul.addr %s342, 4
        %s344 = scalar_lea.vmem %s0, %s343
        %p345 = pneg %p47
        %p346 = pneg %p44
        %p347 = pneg %p68
        %p348 = pneg %p65
        %p349 = pneg %p89
        %p350 = pneg %p86
        %p351 = pneg %p110
        %p352 = pneg %p107
        %p353 = pneg %p131
        %p354 = pneg %p128
        %p355 = pneg %p152
        %p356 = pneg %p149
        %p357 = pneg %p173
        %p358 = pneg %p170
        %p359 = pneg %p194
        %p360 = pneg %p191
        %p361 = pneg %p215
        %p362 = pneg %p212
        %p363 = pneg %p241
        %p364 = pneg %p238
        %s365 = sand.u32 %s228, 1
        %s366 = scalar_lea.sflag [#allocation4], %s365
        %s367 = sand.u32 %s228, 1
        %s368 = smul.addr %s367, 32
        %s369 = scalar_lea.vmem [#allocation5], %s368
        %p370 = pneg %p267
        %p371 = pneg %p264
        %s372 = smul.u32 8, %s26
        %p373 = scmp.lt.s32.totalorder %s372, 31
        %s374 = scalar_select %p373, %s372, 31
        %s375 = smul.addr %s374, 4
        %s376 = scalar_lea.vmem %s10, %s375
        %s377 = smul.u32 8, %s26
        %p378 = scmp.lt.s32.totalorder %s377, 31
        %s379 = scalar_select %p378, %s377, 31
        %s380 = smul.addr %s379, 4
        %s381 = scalar_lea.vmem %s0, %s380
        %s382 = smul.u32 8, %s26
        %s383 = smul.u32 8, %s26
        %s384 = smul.u32 8, %s26
        %p385 = scmp.lt.s32.totalorder %s384, 31
        %s386 = scalar_select %p385, %s384, 31
        %s387 = smul.addr %s386, 4
        %s388 = scalar_lea.vmem %s10, %s387
        %s389 = smul.u32 8, %s26
        %v391 = vld [vmem:[%s381] sm:$0xf]
        %v392 = vld [vmem:[%s381 + $0x4] sm:$0xf]
        %v393 = vld [vmem:[%s381 + $0x8] sm:$0xf]
        %v394 = vld [vmem:[%s381 + $0xc] sm:$0xf]
        %v395 = vld [vmem:[%s381 + $0x10] sm:$0xf]
        %v396 = vld [vmem:[%s381 + $0x14] sm:$0xf]
        %v397 = vld [vmem:[%s381 + $0x18] sm:$0xf]
        %v398 = vld [vmem:[%s381 + $0x1c] sm:$0xf]
        %v399 = vld [vmem:[%s1] sm:$0xf]
        %v400 = vld [vmem:[%s1 + $0x4] sm:$0xf]
        %v401 = vld [vmem:[%s1 + $0x8] sm:$0xf]
        %v402 = vld [vmem:[%s1 + $0xc] sm:$0xf]
        %v403 = vld [vmem:[%s1 + $0x10] sm:$0xf]
        %v404 = vld [vmem:[%s1 + $0x14] sm:$0xf]
        %v405 = vld [vmem:[%s1 + $0x18] sm:$0xf]
        %v406 = vld [vmem:[%s1 + $0x1c] sm:$0xf]
        %v407 = vld [vmem:[%s1 + $0x20] sm:$0xf]
        %v408 = vld [vmem:[%s1 + $0x24] sm:$0xf]
        %v409 = vld [vmem:[%s1 + $0x28] sm:$0xf]
        %v410 = vld [vmem:[%s1 + $0x2c] sm:$0xf]
        %v411 = vld [vmem:[%s1 + $0x30] sm:$0xf]
        %v412 = vld [vmem:[%s1 + $0x34] sm:$0xf]
        %v413 = vld [vmem:[%s1 + $0x38] sm:$0xf]
        %v414 = vld [vmem:[%s1 + $0x3c] sm:$0xf]
        %v415 = vld [vmem:[%s2] sm:$0x1]
        %v417 = vlaneseq
        %v418 = vshrl.u32 %v417, 7
        %v419 = vsub.s32 0, %v418
        %v420 = vrot.slane %v415, %v419
        %v430 = vunpack.c.l.b16 %v391
        %v431 = vunpack.c.l.b16 %v392
        %v432 = vunpack.c.l.b16 %v393
        %v433 = vunpack.c.l.b16 %v394
        %v434 = vunpack.c.l.b16 %v395
        %v435 = vunpack.c.l.b16 %v396
        %v436 = vunpack.c.l.b16 %v397
        %v437 = vunpack.c.l.b16 %v398
        %v438 = vpack.c.b16 %v431, %v430
        %v439 = vpack.c.b16 %v433, %v432
        %v440 = vpack.c.b16 %v435, %v434
        %v441 = vpack.c.b16 %v437, %v436
        %v462 = vunpack.c.l.b16 %v399
        %v463 = vunpack.c.l.b16 %v400
        %v464 = vunpack.c.l.b16 %v401
        %v465 = vunpack.c.l.b16 %v402
        %v466 = vunpack.c.l.b16 %v403
        %v467 = vunpack.c.l.b16 %v404
        %v468 = vunpack.c.l.b16 %v405
        %v469 = vunpack.c.l.b16 %v406
        %v470 = vunpack.c.l.b16 %v407
        %v471 = vunpack.c.l.b16 %v408
        %v472 = vunpack.c.l.b16 %v409
        %v473 = vunpack.c.l.b16 %v410
        %v474 = vunpack.c.l.b16 %v411
        %v475 = vunpack.c.l.b16 %v412
        %v476 = vunpack.c.l.b16 %v413
        %v477 = vunpack.c.l.b16 %v414
        %v478 = vpack.c.b16 %v463, %v462
        %v479 = vpack.c.b16 %v465, %v464
        %v480 = vpack.c.b16 %v467, %v466
        %v481 = vpack.c.b16 %v469, %v468
        %v482 = vpack.c.b16 %v471, %v470
        %v483 = vpack.c.b16 %v473, %v472
        %v484 = vpack.c.b16 %v475, %v474
        %v485 = vpack.c.b16 %v477, %v476
        %494 = vmatprep.subr.bf16.mxu0 0
        %495 = vmatpush1.bf16.msra.mxu0 %v485
        %496 = vmatprep.subr.bf16.mxu0 0
        %497 = vmatpush1.bf16.msra.mxu0 %v484
        %498 = vmatprep.subr.bf16.mxu0 0
        %499 = vmatpush1.bf16.msra.mxu0 %v483
        %500 = vmatprep.subr.bf16.mxu0 0
        %501 = vmatpush1.bf16.msra.mxu0 %v482
        %502 = vmatprep.subr.bf16.mxu0 0
        %503 = vmatpush1.bf16.msra.mxu0 %v481
        %504 = vmatprep.subr.bf16.mxu0 0
        %505 = vmatpush1.bf16.msra.mxu0 %v480
        %506 = vmatprep.subr.bf16.mxu0 0
        %507 = vmatpush1.bf16.msra.mxu0 %v479
        %508 = vmatprep.subr.bf16.mxu0 0
        %509 = vmatpush1.bf16.msra.mxu0 %v478
        %510 = vmatprep.subr.bf16.mxu0 0
        %511 = vmatpush2.bf16.msra.mxu0 0
        %512 = vmatprep.subr.bf16.mxu0 0
        %513 = vmatpush2.bf16.msra.mxu0 0
        %514 = vmatprep.subr.bf16.mxu0 0
        %515 = vmatpush2.bf16.msra.mxu0 0
        %516 = vmatprep.subr.bf16.mxu0 0
        %517 = vmatpush2.bf16.msra.mxu0 0
        %518 = vmatprep.subr.bf16.mxu0 0
        %519 = vmatpush2.bf16.msra.mxu0 0
        %520 = vmatprep.subr.bf16.mxu0 0
        %521 = vmatpush2.bf16.msra.mxu0 0
        %522 = vmatprep.subr.bf16.mxu0 0
        %523 = vmatpush2.bf16.msra.mxu0 0
        %524 = vmatprep.subr.bf16.mxu0 0
        %525 = vmatpush2.bf16.msra.mxu0 0
        %526 = vmatprep.mubr.bf16.mxu0 0
        %527 = vmatmul.mubr.bf16.gmra.mxu0 %v438
        %v528 = vpop.f32.mrf.mxu0
        %v529 = vadd.f32 %v420, %v528
        %v530 = vpop.f32.mrf.mxu0
        %v531 = vpop.f32.mrf.mxu0
        %v532 = vadd.f32 %v420, %v531
        %v533 = vpop.f32.mrf.mxu0
        %534 = vmatprep.mubr.bf16.mxu0 0
        %535 = vmatmul.mubr.bf16.gmra.mxu0 %v439
        %v536 = vpop.f32.mrf.mxu0
        %v537 = vadd.f32 %v420, %v536
        %v538 = vpop.f32.mrf.mxu0
        %v539 = vpop.f32.mrf.mxu0
        %v540 = vadd.f32 %v420, %v539
        %v541 = vpop.f32.mrf.mxu0
        %542 = vmatprep.mubr.bf16.mxu0 0
        %543 = vmatmul.mubr.bf16.gmra.mxu0 %v440
        %v544 = vpop.f32.mrf.mxu0
        %v545 = vadd.f32 %v420, %v544
        %v546 = vpop.f32.mrf.mxu0
        %v547 = vpop.f32.mrf.mxu0
        %v548 = vadd.f32 %v420, %v547
        %v549 = vpop.f32.mrf.mxu0
        %550 = vmatprep.mubr.bf16.mxu0 0
        %551 = vmatmul.mubr.bf16.gmra.mxu0 %v441
        %v552 = vpop.f32.mrf.mxu0
        %v553 = vadd.f32 %v420, %v552
        %v554 = vpop.f32.mrf.mxu0
        %v555 = vpop.f32.mrf.mxu0
        %v556 = vadd.f32 %v420, %v555
        %v557 = vpop.f32.mrf.mxu0
        %558 = vdwg.mxu0
        %v559 = vmax.f32 %v529, 0.0
        %v560 = vmax.f32 %v532, 0.0
        %v561 = vmax.f32 %v537, 0.0
        %v562 = vmax.f32 %v540, 0.0
        %v563 = vmax.f32 %v545, 0.0
        %v564 = vmax.f32 %v548, 0.0
        %v565 = vmax.f32 %v553, 0.0
        %v566 = vmax.f32 %v556, 0.0
        %v567 = vpack.c.bf16 %v560, %v559
        %v568 = vpack.c.bf16 %v562, %v561
        %v569 = vpack.c.bf16 %v564, %v563
        %v570 = vpack.c.bf16 %v566, %v565
        %v571 = vld [vmem:[%s3] sm:$0xf]
        %v572 = vld [vmem:[%s3 + $0x4] sm:$0xf]
        %v573 = vld [vmem:[%s3 + $0x8] sm:$0xf]
        %v574 = vld [vmem:[%s3 + $0xc] sm:$0xf]
        %v575 = vld [vmem:[%s3 + $0x10] sm:$0xf]
        %v576 = vld [vmem:[%s3 + $0x14] sm:$0xf]
        %v577 = vld [vmem:[%s3 + $0x18] sm:$0xf]
        %v578 = vld [vmem:[%s3 + $0x1c] sm:$0xf]
        %v579 = vld [vmem:[%s4] sm:$0x1]
        %v581 = vlaneseq
        %v582 = vshrl.u32 %v581, 7
        %v583 = vsub.s32 0, %v582
        %v584 = vrot.slane %v579, %v583
        %v594 = vunpack.c.l.b16 %v571
        %v595 = vunpack.c.l.b16 %v572
        %v596 = vunpack.c.l.b16 %v573
        %v597 = vunpack.c.l.b16 %v574
        %v598 = vunpack.c.l.b16 %v575
        %v599 = vunpack.c.l.b16 %v576
        %v600 = vunpack.c.l.b16 %v577
        %v601 = vunpack.c.l.b16 %v578
        %v602 = vpack.c.b16 %v595, %v594
        %v603 = vpack.c.b16 %v597, %v596
        %v604 = vpack.c.b16 %v599, %v598
        %v605 = vpack.c.b16 %v601, %v600
        %vm610 = vcmask 523264
        %v612 = vsel %vm610, %v567, 0
        %v615 = vsel %vm610, %v568, 0
        %v618 = vsel %vm610, %v569, 0
        %v621 = vsel %vm610, %v570, 0
        %623 = vmatprep.subr.bf16.mxu0 0
        %624 = vmatpush1.bf16.msra.mxu0 0
        %625 = vmatprep.subr.bf16.mxu0 0
        %626 = vmatpush1.bf16.msra.mxu0 0
        %627 = vmatprep.subr.bf16.mxu0 0
        %628 = vmatpush1.bf16.msra.mxu0 0
        %629 = vmatprep.subr.bf16.mxu0 0
        %630 = vmatpush1.bf16.msra.mxu0 0
        %631 = vmatprep.subr.bf16.mxu0 0
        %632 = vmatpush1.bf16.msra.mxu0 %v605
        %633 = vmatprep.subr.bf16.mxu0 0
        %634 = vmatpush1.bf16.msra.mxu0 %v604
        %635 = vmatprep.subr.bf16.mxu0 0
        %636 = vmatpush1.bf16.msra.mxu0 %v603
        %637 = vmatprep.subr.bf16.mxu0 0
        %638 = vmatpush1.bf16.msra.mxu0 %v602
        %639 = vmatprep.subr.bf16.mxu0 0
        %640 = vmatpush2.bf16.msra.mxu0 0
        %641 = vmatprep.subr.bf16.mxu0 0
        %642 = vmatpush2.bf16.msra.mxu0 0
        %643 = vmatprep.subr.bf16.mxu0 0
        %644 = vmatpush2.bf16.msra.mxu0 0
        %645 = vmatprep.subr.bf16.mxu0 0
        %646 = vmatpush2.bf16.msra.mxu0 0
        %647 = vmatprep.subr.bf16.mxu0 0
        %648 = vmatpush2.bf16.msra.mxu0 0
        %649 = vmatprep.subr.bf16.mxu0 0
        %650 = vmatpush2.bf16.msra.mxu0 0
        %651 = vmatprep.subr.bf16.mxu0 0
        %652 = vmatpush2.bf16.msra.mxu0 0
        %653 = vmatprep.subr.bf16.mxu0 0
        %654 = vmatpush2.bf16.msra.mxu0 0
        %655 = vmatprep.mubr.bf16.mxu0 0
        %656 = vmatmul.mubr.bf16.gmra.mxu0 %v612
        %v657 = vpop.f32.mrf.mxu0
        %v658 = vadd.f32 %v584, %v657
        %v659 = vpop.f32.mrf.mxu0
        %v660 = vpop.f32.mrf.mxu0
        %v661 = vadd.f32 %v584, %v660
        %v662 = vpop.f32.mrf.mxu0
        %663 = vmatprep.mubr.bf16.mxu0 0
        %664 = vmatmul.mubr.bf16.gmra.mxu0 %v615
        %v665 = vpop.f32.mrf.mxu0
        %v666 = vadd.f32 %v584, %v665
        %v667 = vpop.f32.mrf.mxu0
        %v668 = vpop.f32.mrf.mxu0
        %v669 = vadd.f32 %v584, %v668
        %v670 = vpop.f32.mrf.mxu0
        %671 = vmatprep.mubr.bf16.mxu0 0
        %672 = vmatmul.mubr.bf16.gmra.mxu0 %v618
        %v673 = vpop.f32.mrf.mxu0
        %v674 = vadd.f32 %v584, %v673
        %v675 = vpop.f32.mrf.mxu0
        %v676 = vpop.f32.mrf.mxu0
        %v677 = vadd.f32 %v584, %v676
        %v678 = vpop.f32.mrf.mxu0
        %679 = vmatprep.mubr.bf16.mxu0 0
        %680 = vmatmul.mubr.bf16.gmra.mxu0 %v621
        %v681 = vpop.f32.mrf.mxu0
        %v682 = vadd.f32 %v584, %v681
        %v683 = vpop.f32.mrf.mxu0
        %v684 = vpop.f32.mrf.mxu0
        %v685 = vadd.f32 %v584, %v684
        %v686 = vpop.f32.mrf.mxu0
        %687 = vdwg.mxu0
        %v688 = vmax.f32 %v658, 0.0
        %v689 = vmax.f32 %v661, 0.0
        %v690 = vmax.f32 %v666, 0.0
        %v691 = vmax.f32 %v669, 0.0
        %v692 = vmax.f32 %v674, 0.0
        %v693 = vmax.f32 %v677, 0.0
        %v694 = vmax.f32 %v682, 0.0
        %v695 = vmax.f32 %v685, 0.0
        %v696 = vpack.c.bf16 %v689, %v688
        %v697 = vpack.c.bf16 %v691, %v690
        %v698 = vpack.c.bf16 %v693, %v692
        %v699 = vpack.c.bf16 %v695, %v694
        %v700 = vld [vmem:[%s5] sm:$0xf]
        %v701 = vld [vmem:[%s5 + $0x4] sm:$0xf]
        %v702 = vld [vmem:[%s5 + $0x8] sm:$0xf]
        %v703 = vld [vmem:[%s5 + $0xc] sm:$0xf]
        %v704 = vld [vmem:[%s6] sm:$0x1]
        %v706 = vlaneseq
        %v707 = vshrl.u32 %v706, 7
        %v708 = vsub.s32 0, %v707
        %v709 = vrot.slane %v704, %v708
        %v715 = vunpack.c.l.b16 %v700
        %v716 = vunpack.c.l.b16 %v701
        %v717 = vunpack.c.l.b16 %v702
        %v718 = vunpack.c.l.b16 %v703
        %v719 = vpack.c.b16 %v716, %v715
        %v720 = vpack.c.b16 %v718, %v717
        %vm723 = vcmask 261120
        %v725 = vsel %vm723, %v696, 0
        %v728 = vsel %vm723, %v697, 0
        %v731 = vsel %vm723, %v698, 0
        %v734 = vsel %vm723, %v699, 0
        %736 = vmatprep.subr.bf16.mxu0 0
        %737 = vmatpush1.bf16.msra.mxu0 0
        %738 = vmatprep.subr.bf16.mxu0 0
        %739 = vmatpush1.bf16.msra.mxu0 0
        %740 = vmatprep.subr.bf16.mxu0 0
        %741 = vmatpush1.bf16.msra.mxu0 0
        %742 = vmatprep.subr.bf16.mxu0 0
        %743 = vmatpush1.bf16.msra.mxu0 0
        %744 = vmatprep.subr.bf16.mxu0 0
        %745 = vmatpush1.bf16.msra.mxu0 0
        %746 = vmatprep.subr.bf16.mxu0 0
        %747 = vmatpush1.bf16.msra.mxu0 0
        %748 = vmatprep.subr.bf16.mxu0 0
        %749 = vmatpush1.bf16.msra.mxu0 %v720
        %750 = vmatprep.subr.bf16.mxu0 0
        %751 = vmatpush1.bf16.msra.mxu0 %v719
        %752 = vmatprep.subr.bf16.mxu0 0
        %753 = vmatpush2.bf16.msra.mxu0 0
        %754 = vmatprep.subr.bf16.mxu0 0
        %755 = vmatpush2.bf16.msra.mxu0 0
        %756 = vmatprep.subr.bf16.mxu0 0
        %757 = vmatpush2.bf16.msra.mxu0 0
        %758 = vmatprep.subr.bf16.mxu0 0
        %759 = vmatpush2.bf16.msra.mxu0 0
        %760 = vmatprep.subr.bf16.mxu0 0
        %761 = vmatpush2.bf16.msra.mxu0 0
        %762 = vmatprep.subr.bf16.mxu0 0
        %763 = vmatpush2.bf16.msra.mxu0 0
        %764 = vmatprep.subr.bf16.mxu0 0
        %765 = vmatpush2.bf16.msra.mxu0 0
        %766 = vmatprep.subr.bf16.mxu0 0
        %767 = vmatpush2.bf16.msra.mxu0 0
        %768 = vmatprep.mubr.bf16.mxu0 0
        %769 = vmatmul.mubr.bf16.gmra.mxu0 %v725
        %v770 = vpop.f32.mrf.mxu0
        %v771 = vadd.f32 %v709, %v770
        %v772 = vpop.f32.mrf.mxu0
        %v773 = vpop.f32.mrf.mxu0
        %v774 = vadd.f32 %v709, %v773
        %v775 = vpop.f32.mrf.mxu0
        %776 = vmatprep.mubr.bf16.mxu0 0
        %777 = vmatmul.mubr.bf16.gmra.mxu0 %v728
        %v778 = vpop.f32.mrf.mxu0
        %v779 = vadd.f32 %v709, %v778
        %v780 = vpop.f32.mrf.mxu0
        %v781 = vpop.f32.mrf.mxu0
        %v782 = vadd.f32 %v709, %v781
        %v783 = vpop.f32.mrf.mxu0
        %784 = vmatprep.mubr.bf16.mxu0 0
        %785 = vmatmul.mubr.bf16.gmra.mxu0 %v731
        %v786 = vpop.f32.mrf.mxu0
        %v787 = vadd.f32 %v709, %v786
        %v788 = vpop.f32.mrf.mxu0
        %v789 = vpop.f32.mrf.mxu0
        %v790 = vadd.f32 %v709, %v789
        %v791 = vpop.f32.mrf.mxu0
        %792 = vmatprep.mubr.bf16.mxu0 0
        %793 = vmatmul.mubr.bf16.gmra.mxu0 %v734
        %v794 = vpop.f32.mrf.mxu0
        %v795 = vadd.f32 %v709, %v794
        %v796 = vpop.f32.mrf.mxu0
        %v797 = vpop.f32.mrf.mxu0
        %v798 = vadd.f32 %v709, %v797
        %v799 = vpop.f32.mrf.mxu0
        %800 = vdwg.mxu0
        %v801 = vmax.f32 %v771, 0.0
        %v802 = vmax.f32 %v774, 0.0
        %v803 = vmax.f32 %v779, 0.0
        %v804 = vmax.f32 %v782, 0.0
        %v805 = vmax.f32 %v787, 0.0
        %v806 = vmax.f32 %v790, 0.0
        %v807 = vmax.f32 %v795, 0.0
        %v808 = vmax.f32 %v798, 0.0
        %v809 = vpack.c.bf16 %v802, %v801
        %v810 = vpack.c.bf16 %v804, %v803
        %v811 = vpack.c.bf16 %v806, %v805
        %v812 = vpack.c.bf16 %v808, %v807
        %v813 = vld [vmem:[#allocation2] sm:$0xf]
        %v814 = vld [vmem:[#allocation2 + $0x4] sm:$0xf]
        %v815 = vld [vmem:[#allocation2 + $0x8] sm:$0xf]
        %v816 = vld [vmem:[#allocation2 + $0xc] sm:$0xf]
        %v817 = vld [vmem:[#allocation2 + $0x10] sm:$0xf]
        %v818 = vld [vmem:[#allocation2 + $0x14] sm:$0xf]
        %v819 = vld [vmem:[#allocation2 + $0x18] sm:$0xf]
        %v820 = vld [vmem:[#allocation2 + $0x1c] sm:$0xf]
        %v821 = vld [vmem:[%s8] sm:$0x1]
        %v823 = vlaneseq
        %v824 = vshrl.u32 %v823, 7
        %v825 = vsub.s32 0, %v824
        %v826 = vrot.slane %v821, %v825
        %v836 = vunpack.c.l.b16 %v813
        %v837 = vunpack.c.l.b16 %v814
        %v838 = vunpack.c.l.b16 %v815
        %v839 = vunpack.c.l.b16 %v816
        %v840 = vunpack.c.l.b16 %v817
        %v841 = vunpack.c.l.b16 %v818
        %v842 = vunpack.c.l.b16 %v819
        %v843 = vunpack.c.l.b16 %v820
        %v844 = vpack.c.b16 %v837, %v836
        %v845 = vpack.c.b16 %v839, %v838
        %v846 = vpack.c.b16 %v841, %v840
        %v847 = vpack.c.b16 %v843, %v842
        %v853 = vsel %vm610, %v809, 0
        %v856 = vsel %vm610, %v810, 0
        %v859 = vsel %vm610, %v811, 0
        %v862 = vsel %vm610, %v812, 0
        %864 = vmatprep.subr.bf16.mxu0 0
        %865 = vmatpush1.bf16.msra.mxu0 0
        %866 = vmatprep.subr.bf16.mxu0 0
        %867 = vmatpush1.bf16.msra.mxu0 0
        %868 = vmatprep.subr.bf16.mxu0 0
        %869 = vmatpush1.bf16.msra.mxu0 0
        %870 = vmatprep.subr.bf16.mxu0 0
        %871 = vmatpush1.bf16.msra.mxu0 0
        %872 = vmatprep.subr.bf16.mxu0 0
        %873 = vmatpush1.bf16.msra.mxu0 %v847
        %874 = vmatprep.subr.bf16.mxu0 0
        %875 = vmatpush1.bf16.msra.mxu0 %v846
        %876 = vmatprep.subr.bf16.mxu0 0
        %877 = vmatpush1.bf16.msra.mxu0 %v845
        %878 = vmatprep.subr.bf16.mxu0 0
        %879 = vmatpush1.bf16.msra.mxu0 %v844
        %880 = vmatprep.subr.bf16.mxu0 0
        %881 = vmatpush2.bf16.msra.mxu0 0
        %882 = vmatprep.subr.bf16.mxu0 0
        %883 = vmatpush2.bf16.msra.mxu0 0
        %884 = vmatprep.subr.bf16.mxu0 0
        %885 = vmatpush2.bf16.msra.mxu0 0
        %886 = vmatprep.subr.bf16.mxu0 0
        %887 = vmatpush2.bf16.msra.mxu0 0
        %888 = vmatprep.subr.bf16.mxu0 0
        %889 = vmatpush2.bf16.msra.mxu0 0
        %890 = vmatprep.subr.bf16.mxu0 0
        %891 = vmatpush2.bf16.msra.mxu0 0
        %892 = vmatprep.subr.bf16.mxu0 0
        %893 = vmatpush2.bf16.msra.mxu0 0
        %894 = vmatprep.subr.bf16.mxu0 0
        %895 = vmatpush2.bf16.msra.mxu0 0
        %896 = vmatprep.mubr.bf16.mxu0 0
        %897 = vmatmul.mubr.bf16.gmra.mxu0 %v853
        %v898 = vpop.f32.mrf.mxu0
        %v899 = vadd.f32 %v826, %v898
        %v900 = vpop.f32.mrf.mxu0
        %v901 = vpop.f32.mrf.mxu0
        %v902 = vadd.f32 %v826, %v901
        %v903 = vpop.f32.mrf.mxu0
        %904 = vmatprep.mubr.bf16.mxu0 0
        %905 = vmatmul.mubr.bf16.gmra.mxu0 %v856
        %v906 = vpop.f32.mrf.mxu0
        %v907 = vadd.f32 %v826, %v906
        %v908 = vpop.f32.mrf.mxu0
        %v909 = vpop.f32.mrf.mxu0
        %v910 = vadd.f32 %v826, %v909
        %v911 = vpop.f32.mrf.mxu0
        %912 = vmatprep.mubr.bf16.mxu0 0
        %913 = vmatmul.mubr.bf16.gmra.mxu0 %v859
        %v914 = vpop.f32.mrf.mxu0
        %v915 = vadd.f32 %v826, %v914
        %v916 = vpop.f32.mrf.mxu0
        %v917 = vpop.f32.mrf.mxu0
        %v918 = vadd.f32 %v826, %v917
        %v919 = vpop.f32.mrf.mxu0
        %920 = vmatprep.mubr.bf16.mxu0 0
        %921 = vmatmul.mubr.bf16.gmra.mxu0 %v862
        %v922 = vpop.f32.mrf.mxu0
        %v923 = vadd.f32 %v826, %v922
        %v924 = vpop.f32.mrf.mxu0
        %v925 = vpop.f32.mrf.mxu0
        %v926 = vadd.f32 %v826, %v925
        %v927 = vpop.f32.mrf.mxu0
        %928 = vdwg.mxu0
        %v929 = vsub.f32 0.0, %v899
        %v930 = vsub.f32 0.0, %v902
        %v931 = vsub.f32 0.0, %v907
        %v932 = vsub.f32 0.0, %v910
        %v933 = vsub.f32 0.0, %v915
        %v934 = vsub.f32 0.0, %v918
        %v935 = vsub.f32 0.0, %v923
        %v936 = vsub.f32 0.0, %v926
        %v937 = vmul.f32 %v929, 1.442695
        %v938 = vpow.pop %v937
        %v939 = vmul.f32 %v930, 1.442695
        %v940 = vpow.pop %v939
        %v941 = vmul.f32 %v931, 1.442695
        %v942 = vpow.pop %v941
        %v943 = vmul.f32 %v932, 1.442695
        %v944 = vpow.pop %v943
        %v945 = vmul.f32 %v933, 1.442695
        %v946 = vpow.pop %v945
        %v947 = vmul.f32 %v934, 1.442695
        %v948 = vpow.pop %v947
        %v949 = vmul.f32 %v935, 1.442695
        %v950 = vpow.pop %v949
        %v951 = vmul.f32 %v936, 1.442695
        %v952 = vpow.pop %v951
        %v953 = vadd.f32 %v938, 1.0
        %v954 = vadd.f32 %v940, 1.0
        %v955 = vadd.f32 %v942, 1.0
        %v956 = vadd.f32 %v944, 1.0
        %v957 = vadd.f32 %v946, 1.0
        %v958 = vadd.f32 %v948, 1.0
        %v959 = vadd.f32 %v950, 1.0
        %v960 = vadd.f32 %v952, 1.0
        %v961 = vrcp.pop %v953
        %v962 = vrcp.pop %v954
        %v963 = vrcp.pop %v955
        %v964 = vrcp.pop %v956
        %v965 = vrcp.pop %v957
        %v966 = vrcp.pop %v958
        %v967 = vrcp.pop %v959
        %v968 = vrcp.pop %v960
        %v969 = vpack.c.bf16 %v962, %v961
        %v970 = vpack.c.bf16 %v964, %v963
        %v971 = vpack.c.bf16 %v966, %v965
        %v972 = vpack.c.bf16 %v968, %v967
        %v977 = vunpack.c.l.b16 %v969
        %v978 = vunpack.c.h.b16 %v969
        %v979 = vunpack.c.l.b16 %v970
        %v980 = vunpack.c.h.b16 %v970
        %v981 = vunpack.c.l.b16 %v971
        %v982 = vunpack.c.h.b16 %v971
        %v983 = vunpack.c.l.b16 %v972
        %v984 = vunpack.c.h.b16 %v972
        %v985 = vpack.c.b16 %v977, %v977
        %v986 = vpack.c.b16 %v978, %v978
        %v987 = vpack.c.b16 %v979, %v979
        %v988 = vpack.c.b16 %v980, %v980
        %v989 = vpack.c.b16 %v981, %v981
        %v990 = vpack.c.b16 %v982, %v982
        %v991 = vpack.c.b16 %v983, %v983
        %v992 = vpack.c.b16 %v984, %v984
        %1001 = vst [vmem:[%s369] sm:$0xf] %v985
        %1002 = vst [vmem:[%s369 + $0x4] sm:$0xf] %v986
        %1003 = vst [vmem:[%s369 + $0x8] sm:$0xf] %v987
        %1004 = vst [vmem:[%s369 + $0xc] sm:$0xf] %v988
        %1005 = vst [vmem:[%s369 + $0x10] sm:$0xf] %v989
        %1006 = vst [vmem:[%s369 + $0x14] sm:$0xf] %v990
        %1007 = vst [vmem:[%s369 + $0x18] sm:$0xf] %v991
        %1008 = vst [vmem:[%s369 + $0x1c] sm:$0xf] %v992
        %v1013 = vunpack.c.l.b16 %v696
        %v1014 = vunpack.c.h.b16 %v696
        %v1015 = vunpack.c.l.b16 %v697
        %v1016 = vunpack.c.h.b16 %v697
        %v1017 = vunpack.c.l.b16 %v698
        %v1018 = vunpack.c.h.b16 %v698
        %v1019 = vunpack.c.l.b16 %v699
        %v1020 = vunpack.c.h.b16 %v699
        %v1021 = vpack.c.b16 %v1013, %v1013
        %v1022 = vpack.c.b16 %v1014, %v1014
        %v1023 = vpack.c.b16 %v1015, %v1015
        %v1024 = vpack.c.b16 %v1016, %v1016
        %v1025 = vpack.c.b16 %v1017, %v1017
        %v1026 = vpack.c.b16 %v1018, %v1018
        %v1027 = vpack.c.b16 %v1019, %v1019
        %v1028 = vpack.c.b16 %v1020, %v1020
        %vm1037 = vcmask 257024
        %1038 = vst.msk [vmem:[%s388] sm:$0xf] %vm1037, %v1021
        %1039 = vst.msk [vmem:[%s388 + $0x4] sm:$0xf] %vm1037, %v1022
        %1040 = vst.msk [vmem:[%s388 + $0x8] sm:$0xf] %vm1037, %v1023
        %1041 = vst.msk [vmem:[%s388 + $0xc] sm:$0xf] %vm1037, %v1024
        %1042 = vst.msk [vmem:[%s388 + $0x10] sm:$0xf] %vm1037, %v1025
        %1043 = vst.msk [vmem:[%s388 + $0x14] sm:$0xf] %vm1037, %v1026
        %1044 = vst.msk [vmem:[%s388 + $0x18] sm:$0xf] %vm1037, %v1027
        %1045 = vst.msk [vmem:[%s388 + $0x1c] sm:$0xf] %vm1037, %v1028
        %s1046 = sand.u32 %s228, 1
        %s1047 = scalar_lea.sflag [#allocation4], %s1046
        %s1048 = sand.u32 %s228, 1
        %s1049 = smul.addr %s1048, 32
        %s1050 = scalar_lea.vmem [#allocation5], %s1049
        %s1051 = smul.u32 8, %s26
        %p1052 = scmp.lt.s32.totalorder %s1051, 31
        %s1053 = scalar_select %p1052, %s1051, 31
        %s1054 = smul.addr %s1053, 4
        %s1055 = scalar_lea.vmem %s10, %s1054
        // Predicated region
        $region61: #{tpu_custom_call.1} parent=55 // pred_check
          %p1056 = pneg %p238
        $region62: #{tpu_custom_call.1} parent=55 // pred_check_branch
          %1058 = sbr.rel (%p1056) target = $region64
        $region63: #{tpu_custom_call.1} parent=55 // pred_region
          %s1059 = smul.u32 8, %s26
          %s1061 = ssub.s32 512, 512
          %1062 = vsyncadd %s1047, %s1061
          %s1063 = smul.addr %s1059, 64
          %s1064 = scalar_lea.hbm %s9, %s1063
          %s1065 = sshll.u32 %s1050, 4
          %s1066 = int_to_ptr.vmem [resolvable:$true] %s1065
          %1071 = dma.vmem_to_hbm [thread:$0]  %s1066, 512, %s1064, %s1047, 64, 64, 4
        $region64: #{tpu_custom_call.1} parent=55 // pred_fallthru
          _
        // Predicated region
        $region65: #{tpu_custom_call.1} parent=55 // pred_check
          %p1072 = pneg %p264
        $region66: #{tpu_custom_call.1} parent=55 // pred_check_branch
          %1074 = sbr.rel (%p1072) target = $region68
        $region67: #{tpu_custom_call.1} parent=55 // pred_region
          %s1075 = smul.u32 8, %s26
        $region68: #{tpu_custom_call.1} parent=55 // pred_fallthru
          _
      $region56: #{tpu_custom_call.1} parent=5 // pred_fallthru
        _
      %p1076 = scmp.le.s32.totalorder 2, %s21
      // Predicated region
      $region69: #{tpu_custom_call.1} parent=5 // pred_check
        %p1077 = pneg %p1076
      $region70: #{tpu_custom_call.1} parent=5 // pred_check_branch
        %1079 = sbr.rel (%p1077) target = $region72
      $region71: #{tpu_custom_call.1} parent=5 // pred_region
        %s1080 = ssub.s32 %s21, 2
        // Predicated region
        $region73: #{tpu_custom_call.1} parent=71 // pred_check
          %p1081 = pneg %p244
        $region74: #{tpu_custom_call.1} parent=71 // pred_check_branch
          %1083 = sbr.rel (%p1081) target = $region76
        $region75: #{tpu_custom_call.1} parent=71 // pred_region
          %s1084 = sand.u32 %s229, 1
          %s1085 = scalar_lea.sflag [#allocation4], %s1084
          %s1086 = sand.u32 %s229, 1
          %s1087 = smul.addr %s1086, 32
          %s1088 = scalar_lea.vmem [#allocation5], %s1087
          %1089 = dma.done %s1085, 512
        $region76: #{tpu_custom_call.1} parent=71 // pred_fallthru
          _
        // Predicated region
        $region77: #{tpu_custom_call.1} parent=71 // pred_check
          %p1090 = pneg %p270
        $region78: #{tpu_custom_call.1} parent=71 // pred_check_branch
          %1092 = sbr.rel (%p1090) target = $region80
        $region79: #{tpu_custom_call.1} parent=71 // pred_region
          %s1093 = smul.u32 8, %s27
          %p1094 = scmp.lt.s32.totalorder %s1093, 31
          %s1095 = scalar_select %p1094, %s1093, 31
          %s1096 = smul.addr %s1095, 4
          %s1097 = scalar_lea.vmem %s10, %s1096
        $region80: #{tpu_custom_call.1} parent=71 // pred_fallthru
          _
      $region72: #{tpu_custom_call.1} parent=5 // pred_fallthru
        _
    $region6: #{tpu_custom_call.1} parent=1 // loop_footer
      %s25 = sadd.s32 1, %s21
    $region7: #{tpu_custom_call.1} parent=1 // loop_footer_branch
      %20 = sbr.rel target = $region3
    $region8: #{tpu_custom_call.1} parent=1 // loop_exit
      _
    %1098 = vsyncpa [#allocation3], 1
    %s1099 = scalar_lea.sflag [#allocation3], 1
    %1100 = vsyncpa %s1099, 1
    %1101 = vsyncpa [#allocation4], 1
    %s1102 = scalar_lea.sflag [#allocation4], 1
    %1103 = vsyncpa %s1102, 1

// kernel: tpu_custom_call.1
$region0: #{tpu_custom_call.1}
  #allocation0 [shape = 'u32[]', space=smem, size = 0x4, offset = 0x4, fixed_abs, tag = 'smem constant byte address 0x4 - core index']
  #allocation1 [shape = 'u32[144,128]{1,0:T(1,128)}', space=vmem, size = 0x12000, scoped, tag = 'internal scratch']
  %s0 = inlined_call_operand.vmem [shape: f32[256,128], index: 0, kind: input, shape index: {}]
  %s1 = inlined_call_operand.vmem [shape: f32[128,64], index: 1, kind: input, shape index: {}]
  %s2 = inlined_call_operand.vmem [shape: f32[1,64], index: 2, kind: input, shape index: {}]
  %s3 = inlined_call_operand.vmem [shape: f32[64,32], index: 3, kind: input, shape index: {}]
  %s4 = inlined_call_operand.vmem [shape: f32[1,32], index: 4, kind: input, shape index: {}]
  %s5 = inlined_call_operand.vmem [shape: f32[32,64], index: 5, kind: input, shape index: {}]
  %s6 = inlined_call_operand.vmem [shape: f32[1,64], index: 6, kind: input, shape index: {}]
  %s7 = inlined_call_operand.hbm [shape: f32[64,128], index: 7, kind: input, shape index: {}]
  %s8 = inlined_call_operand.vmem [shape: f32[1,128], index: 8, kind: input, shape index: {}]
  %s9 = inlined_call_operand.hbm [shape: f32[256,128], index: 9, kind: output, shape index: {0}]
  %s10 = inlined_call_operand.vmem [shape: f32[256,32], index: 10, kind: output, shape index: {1}]
  %11 = xla_tuple %s9, %s10
  %s12 = sld [smem:[#allocation0]]
  $region81: #{tpu_custom_call.1} parent=0
    _
  %s14 = ssub.s32 1, %s12
  %s15 = scalar_select 0, %s14, %s12
  $region1: #{tpu_custom_call.1} parent=0
    #allocation2 [shape = 'u8[32768]{0}', space=vmem, size = 0x8000, scoped, tag = 'input window, operand 7, single buffered']
    #allocation3 [shape = 's32[2]{0}', space=sflag, size = 0x8, scoped, tag = 'scoped memory for tpu_custom_call.1']
    #allocation4 [shape = 's32[2]{0}', space=sflag, size = 0x8, scoped, tag = 'scoped memory for tpu_custom_call.1']
    #allocation5 [shape = 'u8[65536]{0}', space=vmem, size = 0x10000, scoped, tag = 'output window, operand 0']
    %16 = vsyncpa [#allocation3], 0
    %17 = vsyncpa [#allocation4], 0
    %s18 = scalar_lea.sflag [#allocation4], 1
    %19 = vsyncpa %s18, 0
    loop: start=0, step=1, limit=6
    $region2: #{tpu_custom_call.1} parent=1 // loop_pre_header
      _
    $region3: #{tpu_custom_call.1} parent=1 // loop_header
      %s21 = sphi 0, %s25
      %p22 = scmp.ge.s32.totalorder %s21, 6
      %s31 = sphi 0, %s33
      %s34 = sphi 0, %s31
      %s35 = sphi 0, %s34
      %s51 = sphi 0, %s35
      %s55 = sphi 0, %s55
      %s57 = sphi 0, %s55
      %s58 = sphi 0, %s57
      %s72 = sphi 0, %s58
      %s76 = sphi 0, %s76
      %s78 = sphi 0, %s76
      %s79 = sphi 0, %s78
      %s93 = sphi 0, %s79
      %s97 = sphi 0, %s97
      %s99 = sphi 0, %s97
      %s100 = sphi 0, %s99
      %s114 = sphi 0, %s100
      %s118 = sphi 0, %s118
      %s120 = sphi 0, %s118
      %s121 = sphi 0, %s120
      %s135 = sphi 0, %s121
      %s139 = sphi 0, %s139
      %s141 = sphi 0, %s139
      %s142 = sphi 0, %s141
      %s156 = sphi 0, %s142
      %s160 = sphi 0, %s160
      %s162 = sphi 0, %s160
      %s163 = sphi 0, %s162
      %s177 = sphi 0, %s163
      %s181 = sphi 0, %s181
      %s183 = sphi 0, %s181
      %s184 = sphi 0, %s183
      %s198 = sphi 0, %s184
      %s202 = sphi 0, %s202
      %s204 = sphi 0, %s202
      %s205 = sphi 0, %s204
      %s219 = sphi 0, %s205
      %s225 = sphi 0, %s227
      %s228 = sphi 0, %s225
      %s229 = sphi 0, %s228
      %s245 = sphi 0, %s229
      %s251 = sphi 0, %s253
      %s254 = sphi 0, %s251
      %s255 = sphi 0, %s254
      %s271 = sphi 0, %s255
    $region4: #{tpu_custom_call.1} parent=1 // loop_header_branch
      %24 = sbr.rel (%p22) target = $region8
    $region5: #{tpu_custom_call.1} parent=1 // loop_body
      %s26 = ssub.s32 %s21, 1
      %s27 = ssub.s32 %s21, 2
      %s28 = sadd.s32 %s21, 1
      %s29 = ssub.s32 %s21, %s28
      %p30 = scmp.eq.s32.totalorder %s29, 0
      %s32 = sadd.s32 %s31, 1
      %s33 = scalar_select %p30, %s31, %s32
      %p36 = pneg %p30
      %p37 = scmp.eq.s32.totalorder %s21, 3
      %p38 = por %p36, %p37
      %p39 = scmp.ne.s32.totalorder %s31, %s34
      %p40 = scmp.eq.s32.totalorder %s21, 0
      %p41 = por %p39, %p40
      %p42 = scmp.ne.s32.totalorder %s31, %s34
      %p43 = scmp.eq.s32.totalorder %s26, 3
      %p44 = por %p42, %p43
      %p45 = scmp.ne.s32.totalorder %s34, %s35
      %p46 = scmp.eq.s32.totalorder %s26, 0
      %p47 = por %p45, %p46
      %p48 = scmp.ne.s32.totalorder %s34, %s35
      %p49 = scmp.eq.s32.totalorder %s27, 3
      %p50 = por %p48, %p49
      %p52 = scmp.ne.s32.totalorder %s35, %s51
      %p53 = scmp.eq.s32.totalorder %s27, 0
      %p54 = por %p52, %p53
      %s56 = sadd.s32 %s55, 1
      %p59 = scmp.eq.s32.totalorder %s21, 3
      %p60 = scmp.ne.s32.totalorder %s55, %s57
      %p61 = scmp.eq.s32.totalorder %s21, 0
      %p62 = por %p60, %p61
      %p63 = scmp.ne.s32.totalorder %s55, %s57
      %p64 = scmp.eq.s32.totalorder %s26, 3
      %p65 = por %p63, %p64
      %p66 = scmp.ne.s32.totalorder %s57, %s58
      %p67 = scmp.eq.s32.totalorder %s26, 0
      %p68 = por %p66, %p67
      %p69 = scmp.ne.s32.totalorder %s57, %s58
      %p70 = scmp.eq.s32.totalorder %s27, 3
      %p71 = por %p69, %p70
      %p73 = scmp.ne.s32.totalorder %s58, %s72
      %p74 = scmp.eq.s32.totalorder %s27, 0
      %p75 = por %p73, %p74
      %s77 = sadd.s32 %s76, 1
      %p80 = scmp.eq.s32.totalorder %s21, 3
      %p81 = scmp.ne.s32.totalorder %s76, %s78
      %p82 = scmp.eq.s32.totalorder %s21, 0
      %p83 = por %p81, %p82
      %p84 = scmp.ne.s32.totalorder %s76, %s78
      %p85 = scmp.eq.s32.totalorder %s26, 3
      %p86 = por %p84, %p85
      %p87 = scmp.ne.s32.totalorder %s78, %s79
      %p88 = scmp.eq.s32.totalorder %s26, 0
      %p89 = por %p87, %p88
      %p90 = scmp.ne.s32.totalorder %s78, %s79
      %p91 = scmp.eq.s32.totalorder %s27, 3
      %p92 = por %p90, %p91
      %p94 = scmp.ne.s32.totalorder %s79, %s93
      %p95 = scmp.eq.s32.totalorder %s27, 0
      %p96 = por %p94, %p95
      %s98 = sadd.s32 %s97, 1
      %p101 = scmp.eq.s32.totalorder %s21, 3
      %p102 = scmp.ne.s32.totalorder %s97, %s99
      %p103 = scmp.eq.s32.totalorder %s21, 0
      %p104 = por %p102, %p103
      %p105 = scmp.ne.s32.totalorder %s97, %s99
      %p106 = scmp.eq.s32.totalorder %s26, 3
      %p107 = por %p105, %p106
      %p108 = scmp.ne.s32.totalorder %s99, %s100
      %p109 = scmp.eq.s32.totalorder %s26, 0
      %p110 = por %p108, %p109
      %p111 = scmp.ne.s32.totalorder %s99, %s100
      %p112 = scmp.eq.s32.totalorder %s27, 3
      %p113 = por %p111, %p112
      %p115 = scmp.ne.s32.totalorder %s100, %s114
      %p116 = scmp.eq.s32.totalorder %s27, 0
      %p117 = por %p115, %p116
      %s119 = sadd.s32 %s118, 1
      %p122 = scmp.eq.s32.totalorder %s21, 3
      %p123 = scmp.ne.s32.totalorder %s118, %s120
      %p124 = scmp.eq.s32.totalorder %s21, 0
      %p125 = por %p123, %p124
      %p126 = scmp.ne.s32.totalorder %s118, %s120
      %p127 = scmp.eq.s32.totalorder %s26, 3
      %p128 = por %p126, %p127
      %p129 = scmp.ne.s32.totalorder %s120, %s121
      %p130 = scmp.eq.s32.totalorder %s26, 0
      %p131 = por %p129, %p130
      %p132 = scmp.ne.s32.totalorder %s120, %s121
      %p133 = scmp.eq.s32.totalorder %s27, 3
      %p134 = por %p132, %p133
      %p136 = scmp.ne.s32.totalorder %s121, %s135
      %p137 = scmp.eq.s32.totalorder %s27, 0
      %p138 = por %p136, %p137
      %s140 = sadd.s32 %s139, 1
      %p143 = scmp.eq.s32.totalorder %s21, 3
      %p144 = scmp.ne.s32.totalorder %s139, %s141
      %p145 = scmp.eq.s32.totalorder %s21, 0
      %p146 = por %p144, %p145
      %p147 = scmp.ne.s32.totalorder %s139, %s141
      %p148 = scmp.eq.s32.totalorder %s26, 3
      %p149 = por %p147, %p148
      %p150 = scmp.ne.s32.totalorder %s141, %s142
      %p151 = scmp.eq.s32.totalorder %s26, 0
      %p152 = por %p150, %p151
      %p153 = scmp.ne.s32.totalorder %s141, %s142
      %p154 = scmp.eq.s32.totalorder %s27, 3
      %p155 = por %p153, %p154
      %p157 = scmp.ne.s32.totalorder %s142, %s156
      %p158 = scmp.eq.s32.totalorder %s27, 0
      %p159 = por %p157, %p158
      %s161 = sadd.s32 %s160, 1
      %p164 = scmp.eq.s32.totalorder %s21, 3
      %p165 = scmp.ne.s32.totalorder %s160, %s162
      %p166 = scmp.eq.s32.totalorder %s21, 0
      %p167 = por %p165, %p166
      %p168 = scmp.ne.s32.totalorder %s160, %s162
      %p169 = scmp.eq.s32.totalorder %s26, 3
      %p170 = por %p168, %p169
      %p171 = scmp.ne.s32.totalorder %s162, %s163
      %p172 = scmp.eq.s32.totalorder %s26, 0
      %p173 = por %p171, %p172
      %p174 = scmp.ne.s32.totalorder %s162, %s163
      %p175 = scmp.eq.s32.totalorder %s27, 3
      %p176 = por %p174, %p175
      %p178 = scmp.ne.s32.totalorder %s163, %s177
      %p179 = scmp.eq.s32.totalorder %s27, 0
      %p180 = por %p178, %p179
      %s182 = sadd.s32 %s181, 1
      %p185 = scmp.eq.s32.totalorder %s21, 3
      %p186 = scmp.ne.s32.totalorder %s181, %s183
      %p187 = scmp.eq.s32.totalorder %s21, 0
      %p188 = por %p186, %p187
      %p189 = scmp.ne.s32.totalorder %s181, %s183
      %p190 = scmp.eq.s32.totalorder %s26, 3
      %p191 = por %p189, %p190
      %p192 = scmp.ne.s32.totalorder %s183, %s184
      %p193 = scmp.eq.s32.totalorder %s26, 0
      %p194 = por %p192, %p193
      %p195 = scmp.ne.s32.totalorder %s183, %s184
      %p196 = scmp.eq.s32.totalorder %s27, 3
      %p197 = por %p195, %p196
      %p199 = scmp.ne.s32.totalorder %s184, %s198
      %p200 = scmp.eq.s32.totalorder %s27, 0
      %p201 = por %p199, %p200
      %s203 = sadd.s32 %s202, 1
      %p206 = scmp.eq.s32.totalorder %s21, 3
      %p207 = scmp.ne.s32.totalorder %s202, %s204
      %p208 = scmp.eq.s32.totalorder %s21, 0
      %p209 = por %p207, %p208
      %p210 = scmp.ne.s32.totalorder %s202, %s204
      %p211 = scmp.eq.s32.totalorder %s26, 3
      %p212 = por %p210, %p211
      %p213 = scmp.ne.s32.totalorder %s204, %s205
      %p214 = scmp.eq.s32.totalorder %s26, 0
      %p215 = por %p213, %p214
      %p216 = scmp.ne.s32.totalorder %s204, %s205
      %p217 = scmp.eq.s32.totalorder %s27, 3
      %p218 = por %p216, %p217
      %p220 = scmp.ne.s32.totalorder %s205, %s219
      %p221 = scmp.eq.s32.totalorder %s27, 0
      %p222 = por %p220, %p221
      %s223 = ssub.s32 %s21, %s28
      %p224 = scmp.eq.s32.totalorder %s223, 0
      %s226 = sadd.s32 %s225, 1
      %s227 = scalar_select %p224, %s225, %s226
      %p230 = pneg %p224
      %p231 = scmp.eq.s32.totalorder %s21, 3
      %p232 = por %p230, %p231
      %p233 = scmp.ne.s32.totalorder %s225, %s228
      %p234 = scmp.eq.s32.totalorder %s21, 0
      %p235 = por %p233, %p234
      %p236 = scmp.ne.s32.totalorder %s225, %s228
      %p237 = scmp.eq.s32.totalorder %s26, 3
      %p238 = por %p236, %p237
      %p239 = scmp.ne.s32.totalorder %s228, %s229
      %p240 = scmp.eq.s32.totalorder %s26, 0
      %p241 = por %p239, %p240
      %p242 = scmp.ne.s32.totalorder %s228, %s229
      %p243 = scmp.eq.s32.totalorder %s27, 3
      %p244 = por %p242, %p243
      %p246 = scmp.ne.s32.totalorder %s229, %s245
      %p247 = scmp.eq.s32.totalorder %s27, 0
      %p248 = por %p246, %p247
      %s249 = ssub.s32 %s21, %s28
      %p250 = scmp.eq.s32.totalorder %s249, 0
      %s252 = sadd.s32 %s251, 1
      %s253 = scalar_select %p250, %s251, %s252
      %p256 = pneg %p250
      %p257 = scmp.eq.s32.totalorder %s21, 3
      %p258 = por %p256, %p257
      %p259 = scmp.ne.s32.totalorder %s251, %s254
      %p260 = scmp.eq.s32.totalorder %s21, 0
      %p261 = por %p259, %p260
      %p262 = scmp.ne.s32.totalorder %s251, %s254
      %p263 = scmp.eq.s32.totalorder %s26, 3
      %p264 = por %p262, %p263
      %p265 = scmp.ne.s32.totalorder %s254, %s255
      %p266 = scmp.eq.s32.totalorder %s26, 0
      %p267 = por %p265, %p266
      %p268 = scmp.ne.s32.totalorder %s254, %s255
      %p269 = scmp.eq.s32.totalorder %s27, 3
      %p270 = por %p268, %p269
      %p272 = scmp.ne.s32.totalorder %s255, %s271
      %p273 = scmp.eq.s32.totalorder %s27, 0
      %p274 = por %p272, %p273
      %p275 = scmp.le.s32.totalorder 1, %s21
      %p276 = scmp.lt.s32.totalorder %s21, 5
      %p277 = pnand %p275, %p276
      %p278 = pneg %p277
      // Predicated region
      $region9: #{tpu_custom_call.1} parent=5 // pred_check
        _
      $region10: #{tpu_custom_call.1} parent=5 // pred_check_branch
        %280 = sbr.rel (%p277) target = $region12
      $region11: #{tpu_custom_call.1} parent=5 // pred_region
        %s281 = ssub.s32 %s21, 1
        // Predicated region
        $region13: #{tpu_custom_call.1} parent=11 // pred_check
          %p282 = pneg %p68
        $region14: #{tpu_custom_call.1} parent=11 // pred_check_branch
          %284 = sbr.rel (%p282) target = $region16
        $region15: #{tpu_custom_call.1} parent=11 // pred_region
          _
        $region16: #{tpu_custom_call.1} parent=11 // pred_fallthru
          _
        // Predicated region
        $region17: #{tpu_custom_call.1} parent=11 // pred_check
          %p285 = pneg %p89
        $region18: #{tpu_custom_call.1} parent=11 // pred_check_branch
          %287 = sbr.rel (%p285) target = $region20
        $region19: #{tpu_custom_call.1} parent=11 // pred_region
          _
        $region20: #{tpu_custom_call.1} parent=11 // pred_fallthru
          _
        // Predicated region
        $region21: #{tpu_custom_call.1} parent=11 // pred_check
          %p288 = pneg %p110
        $region22: #{tpu_custom_call.1} parent=11 // pred_check_branch
          %290 = sbr.rel (%p288) target = $region24
        $region23: #{tpu_custom_call.1} parent=11 // pred_region
          _
        $region24: #{tpu_custom_call.1} parent=11 // pred_fallthru
          _
        // Predicated region
        $region25: #{tpu_custom_call.1} parent=11 // pred_check
          %p291 = pneg %p131
        $region26: #{tpu_custom_call.1} parent=11 // pred_check_branch
          %293 = sbr.rel (%p291) target = $region28
        $region27: #{tpu_custom_call.1} parent=11 // pred_region
          _
        $region28: #{tpu_custom_call.1} parent=11 // pred_fallthru
          _
        // Predicated region
        $region29: #{tpu_custom_call.1} parent=11 // pred_check
          %p294 = pneg %p152
        $region30: #{tpu_custom_call.1} parent=11 // pred_check_branch
          %296 = sbr.rel (%p294) target = $region32
        $region31: #{tpu_custom_call.1} parent=11 // pred_region
          _
        $region32: #{tpu_custom_call.1} parent=11 // pred_fallthru
          _
        // Predicated region
        $region33: #{tpu_custom_call.1} parent=11 // pred_check
          %p297 = pneg %p173
        $region34: #{tpu_custom_call.1} parent=11 // pred_check_branch
          %299 = sbr.rel (%p297) target = $region36
        $region35: #{tpu_custom_call.1} parent=11 // pred_region
          _
        $region36: #{tpu_custom_call.1} parent=11 // pred_fallthru
          _
        // Predicated region
        $region37: #{tpu_custom_call.1} parent=11 // pred_check
          %p300 = pneg %p194
        $region38: #{tpu_custom_call.1} parent=11 // pred_check_branch
          %302 = sbr.rel (%p300) target = $region40
        $region39: #{tpu_custom_call.1} parent=11 // pred_region
          %s304 = ssub.s32 1024, 1024
          %305 = vsyncadd [#allocation3], %s304
          %s306 = sshll.u32 [#allocation2], 4
          %s307 = int_to_ptr.vmem [resolvable:$true] %s306
          %312 = dma.hbm_to_vmem [thread:$0]  %s7, 1024, %s307, [#allocation3], 128, 128, 8
        $region40: #{tpu_custom_call.1} parent=11 // pred_fallthru
          _
        // Predicated region
        $region41: #{tpu_custom_call.1} parent=11 // pred_check
          %p313 = pneg %p215
        $region42: #{tpu_custom_call.1} parent=11 // pred_check_branch
          %315 = sbr.rel (%p313) target = $region44
        $region43: #{tpu_custom_call.1} parent=11 // pred_region
          _
        $region44: #{tpu_custom_call.1} parent=11 // pred_fallthru
          _
      $region12: #{tpu_custom_call.1} parent=5 // pred_fallthru
        _
      %p316 = scmp.lt.s32.totalorder %s21, 4
      // Predicated region
      $region45: #{tpu_custom_call.1} parent=5 // pred_check
        %p317 = pneg %p316
      $region46: #{tpu_custom_call.1} parent=5 // pred_check_branch
        %319 = sbr.rel (%p317) target = $region48
      $region47: #{tpu_custom_call.1} parent=5 // pred_region
        // Predicated region
        $region49: #{tpu_custom_call.1} parent=47 // pred_check
          %p320 = pneg %p41
        $region50: #{tpu_custom_call.1} parent=47 // pred_check_branch
          %322 = sbr.rel (%p320) target = $region52
        $region51: #{tpu_custom_call.1} parent=47 // pred_region
          %s323 = smul.u32 8, %s21
          %p324 = scmp.lt.s32.totalorder %s323, 31
          %s325 = scalar_select %p324, %s323, 31
          %s326 = smul.addr %s325, 8
          %s327 = scalar_lea.vmem %s0, %s326
          %s328 = smul.u32 8, %s21
        $region52: #{tpu_custom_call.1} parent=47 // pred_fallthru
          _
      $region48: #{tpu_custom_call.1} parent=5 // pred_fallthru
        _
      %p329 = scmp.le.s32.totalorder 1, %s21
      %p330 = scmp.lt.s32.totalorder %s21, 5
      %p331 = pnand %p329, %p330
      %p332 = pneg %p331
      // Predicated region
      $region53: #{tpu_custom_call.1} parent=5 // pred_check
        _
      $region54: #{tpu_custom_call.1} parent=5 // pred_check_branch
        %334 = sbr.rel (%p331) target = $region56
      $region55: #{tpu_custom_call.1} parent=5 // pred_region
        %s335 = ssub.s32 %s21, 1
        // Predicated region
        $region57: #{tpu_custom_call.1} parent=55 // pred_check
          %p336 = pneg %p194
        $region58: #{tpu_custom_call.1} parent=55 // pred_check_branch
          %338 = sbr.rel (%p336) target = $region60
        $region59: #{tpu_custom_call.1} parent=55 // pred_region
          %339 = dma.done [#allocation3], 1024
        $region60: #{tpu_custom_call.1} parent=55 // pred_fallthru
          _
        %s340 = smul.u32 8, %s26
        %p341 = scmp.lt.s32.totalorder %s340, 31
        %s342 = scalar_select %p341, %s340, 31
        %s343 = smul.addr %s342, 8
        %s344 = scalar_lea.vmem %s0, %s343
        %p345 = pneg %p47
        %p346 = pneg %p44
        %p347 = pneg %p68
        %p348 = pneg %p65
        %p349 = pneg %p89
        %p350 = pneg %p86
        %p351 = pneg %p110
        %p352 = pneg %p107
        %p353 = pneg %p131
        %p354 = pneg %p128
        %p355 = pneg %p152
        %p356 = pneg %p149
        %p357 = pneg %p173
        %p358 = pneg %p170
        %p359 = pneg %p194
        %p360 = pneg %p191
        %p361 = pneg %p215
        %p362 = pneg %p212
        %p363 = pneg %p241
        %p364 = pneg %p238
        %s365 = sand.u32 %s228, 1
        %s366 = scalar_lea.sflag [#allocation4], %s365
        %s367 = sand.u32 %s228, 1
        %s368 = smul.addr %s367, 64
        %s369 = scalar_lea.vmem [#allocation5], %s368
        %p370 = pneg %p267
        %p371 = pneg %p264
        %s372 = smul.u32 8, %s26
        %p373 = scmp.lt.s32.totalorder %s372, 31
        %s374 = scalar_select %p373, %s372, 31
        %s375 = smul.addr %s374, 8
        %s376 = scalar_lea.vmem %s10, %s375
        %s377 = smul.u32 8, %s26
        %p378 = scmp.lt.s32.totalorder %s377, 31
        %s379 = scalar_select %p378, %s377, 31
        %s380 = smul.addr %s379, 8
        %s381 = scalar_lea.vmem %s0, %s380
        %s382 = smul.u32 8, %s26
        %s383 = smul.u32 8, %s26
        %s384 = smul.u32 8, %s26
        %p385 = scmp.lt.s32.totalorder %s384, 31
        %s386 = scalar_select %p385, %s384, 31
        %s387 = smul.addr %s386, 8
        %s388 = scalar_lea.vmem %s10, %s387
        %s389 = smul.u32 8, %s26
        %v390 = vld [vmem:[%s381] sm:$0xff]
        %v391 = vld [vmem:[%s381 + $0x8] sm:$0xff]
        %v392 = vld [vmem:[%s381 + $0x10] sm:$0xff]
        %v393 = vld [vmem:[%s381 + $0x18] sm:$0xff]
        %v394 = vld [vmem:[%s381 + $0x20] sm:$0xff]
        %v395 = vld [vmem:[%s381 + $0x28] sm:$0xff]
        %v396 = vld [vmem:[%s381 + $0x30] sm:$0xff]
        %v397 = vld [vmem:[%s381 + $0x38] sm:$0xff]
        %v398 = vld [vmem:[%s1] sm:$0xff]
        %v399 = vld [vmem:[%s1 + $0x8] sm:$0xff]
        %v400 = vld [vmem:[%s1 + $0x10] sm:$0xff]
        %v401 = vld [vmem:[%s1 + $0x18] sm:$0xff]
        %v402 = vld [vmem:[%s1 + $0x20] sm:$0xff]
        %v403 = vld [vmem:[%s1 + $0x28] sm:$0xff]
        %v404 = vld [vmem:[%s1 + $0x30] sm:$0xff]
        %v405 = vld [vmem:[%s1 + $0x38] sm:$0xff]
        %v406 = vld [vmem:[%s1 + $0x40] sm:$0xff]
        %v407 = vld [vmem:[%s1 + $0x48] sm:$0xff]
        %v408 = vld [vmem:[%s1 + $0x50] sm:$0xff]
        %v409 = vld [vmem:[%s1 + $0x58] sm:$0xff]
        %v410 = vld [vmem:[%s1 + $0x60] sm:$0xff]
        %v411 = vld [vmem:[%s1 + $0x68] sm:$0xff]
        %v412 = vld [vmem:[%s1 + $0x70] sm:$0xff]
        %v413 = vld [vmem:[%s1 + $0x78] sm:$0xff]
        %v414 = vld [vmem:[%s2] sm:$0x1]
        %v416 = vlaneseq
        %v417 = vshrl.u32 %v416, 7
        %v418 = vsub.s32 0, %v417
        %v419 = vrot.slane %v414, %v418
        %421 = vmatprep.subr.mxu0 0.0
        %422 = vmatpush1.msra.mxu0 %v413
        %423 = vmatprep.subr.mxu0 0.0
        %424 = vmatpush1.msra.mxu0 %v412
        %425 = vmatprep.subr.mxu0 0.0
        %426 = vmatpush1.msra.mxu0 %v411
        %427 = vmatprep.subr.mxu0 0.0
        %428 = vmatpush1.msra.mxu0 %v410
        %429 = vmatprep.subr.mxu0 0.0
        %430 = vmatpush1.msra.mxu0 %v409
        %431 = vmatprep.subr.mxu0 0.0
        %432 = vmatpush1.msra.mxu0 %v408
        %433 = vmatprep.subr.mxu0 0.0
        %434 = vmatpush1.msra.mxu0 %v407
        %435 = vmatprep.subr.mxu0 0.0
        %436 = vmatpush1.msra.mxu0 %v406
        %437 = vmatprep.subr.mxu0 0.0
        %438 = vmatpush1.msra.mxu0 %v405
        %439 = vmatprep.subr.mxu0 0.0
        %440 = vmatpush1.msra.mxu0 %v404
        %441 = vmatprep.subr.mxu0 0.0
        %442 = vmatpush1.msra.mxu0 %v403
        %443 = vmatprep.subr.mxu0 0.0
        %444 = vmatpush1.msra.mxu0 %v402
        %445 = vmatprep.subr.mxu0 0.0
        %446 = vmatpush1.msra.mxu0 %v401
        %447 = vmatprep.subr.mxu0 0.0
        %448 = vmatpush1.msra.mxu0 %v400
        %449 = vmatprep.subr.mxu0 0.0
        %450 = vmatpush1.msra.mxu0 %v399
        %451 = vmatprep.subr.mxu0 0.0
        %452 = vmatpush1.msra.mxu0 %v398
        %453 = vmatprep.subr.mxu0 0.0
        %454 = vmatpush2.msra.mxu0 0.0
        %455 = vmatprep.subr.mxu0 0.0
        %456 = vmatpush2.msra.mxu0 0.0
        %457 = vmatprep.subr.mxu0 0.0
        %458 = vmatpush2.msra.mxu0 0.0
        %459 = vmatprep.subr.mxu0 0.0
        %460 = vmatpush2.msra.mxu0 0.0
        %461 = vmatprep.subr.mxu0 0.0
        %462 = vmatpush2.msra.mxu0 0.0
        %463 = vmatprep.subr.mxu0 0.0
        %464 = vmatpush2.msra.mxu0 0.0
        %465 = vmatprep.subr.mxu0 0.0
        %466 = vmatpush2.msra.mxu0 0.0
        %467 = vmatprep.subr.mxu0 0.0
        %468 = vmatpush2.msra.mxu0 0.0
        %469 = vmatprep.subr.mxu0 0.0
        %470 = vmatpush2.msra.mxu0 0.0
        %471 = vmatprep.subr.mxu0 0.0
        %472 = vmatpush2.msra.mxu0 0.0
        %473 = vmatprep.subr.mxu0 0.0
        %474 = vmatpush2.msra.mxu0 0.0
        %475 = vmatprep.subr.mxu0 0.0
        %476 = vmatpush2.msra.mxu0 0.0
        %477 = vmatprep.subr.mxu0 0.0
        %478 = vmatpush2.msra.mxu0 0.0
        %479 = vmatprep.subr.mxu0 0.0
        %480 = vmatpush2.msra.mxu0 0.0
        %481 = vmatprep.subr.mxu0 0.0
        %482 = vmatpush2.msra.mxu0 0.0
        %483 = vmatprep.subr.mxu0 0.0
        %484 = vmatpush2.msra.mxu0 0.0
        %485 = vmatprep.mubr.f32.mxu0 0.0
        %486 = vmatmul.mubr.f32.gmra.mxu0 %v390
        %v487 = vpop.f32.mrf.mxu0
        %v488 = vadd.f32 %v419, %v487
        %v489 = vpop.f32.mrf.mxu0
        %490 = vmatprep.mubr.f32.mxu0 0.0
        %491 = vmatmul.mubr.f32.gmra.mxu0 %v391
        %v492 = vpop.f32.mrf.mxu0
        %v493 = vadd.f32 %v419, %v492
        %v494 = vpop.f32.mrf.mxu0
        %495 = vmatprep.mubr.f32.mxu0 0.0
        %496 = vmatmul.mubr.f32.gmra.mxu0 %v392
        %v497 = vpop.f32.mrf.mxu0
        %v498 = vadd.f32 %v419, %v497
        %v499 = vpop.f32.mrf.mxu0
        %500 = vmatprep.mubr.f32.mxu0 0.0
        %501 = vmatmul.mubr.f32.gmra.mxu0 %v393
        %v502 = vpop.f32.mrf.mxu0
        %v503 = vadd.f32 %v419, %v502
        %v504 = vpop.f32.mrf.mxu0
        %505 = vmatprep.mubr.f32.mxu0 0.0
        %506 = vmatmul.mubr.f32.gmra.mxu0 %v394
        %v507 = vpop.f32.mrf.mxu0
        %v508 = vadd.f32 %v419, %v507
        %v509 = vpop.f32.mrf.mxu0
        %510 = vmatprep.mubr.f32.mxu0 0.0
        %511 = vmatmul.mubr.f32.gmra.mxu0 %v395
        %v512 = vpop.f32.mrf.mxu0
        %v513 = vadd.f32 %v419, %v512
        %v514 = vpop.f32.mrf.mxu0
        %515 = vmatprep.mubr.f32.mxu0 0.0
        %516 = vmatmul.mubr.f32.gmra.mxu0 %v396
        %v517 = vpop.f32.mrf.mxu0
        %v518 = vadd.f32 %v419, %v517
        %v519 = vpop.f32.mrf.mxu0
        %520 = vmatprep.mubr.f32.mxu0 0.0
        %521 = vmatmul.mubr.f32.gmra.mxu0 %v397
        %v522 = vpop.f32.mrf.mxu0
        %v523 = vadd.f32 %v419, %v522
        %v524 = vpop.f32.mrf.mxu0
        %525 = vdwg.mxu0
        %v526 = vmax.f32 %v488, 0.0
        %v527 = vmax.f32 %v493, 0.0
        %v528 = vmax.f32 %v498, 0.0
        %v529 = vmax.f32 %v503, 0.0
        %v530 = vmax.f32 %v508, 0.0
        %v531 = vmax.f32 %v513, 0.0
        %v532 = vmax.f32 %v518, 0.0
        %v533 = vmax.f32 %v523, 0.0
        %v534 = vld [vmem:[%s3] sm:$0xff]
        %v535 = vld [vmem:[%s3 + $0x8] sm:$0xff]
        %v536 = vld [vmem:[%s3 + $0x10] sm:$0xff]
        %v537 = vld [vmem:[%s3 + $0x18] sm:$0xff]
        %v538 = vld [vmem:[%s3 + $0x20] sm:$0xff]
        %v539 = vld [vmem:[%s3 + $0x28] sm:$0xff]
        %v540 = vld [vmem:[%s3 + $0x30] sm:$0xff]
        %v541 = vld [vmem:[%s3 + $0x38] sm:$0xff]
        %v542 = vld [vmem:[%s4] sm:$0x1]
        %v544 = vlaneseq
        %v545 = vshrl.u32 %v544, 7
        %v546 = vsub.s32 0, %v545
        %v547 = vrot.slane %v542, %v546
        %vm549 = vcmask 523264
        %v551 = vsel %vm549, %v526, 0
        %v554 = vsel %vm549, %v527, 0
        %v557 = vsel %vm549, %v528, 0
        %v560 = vsel %vm549, %v529, 0
        %v563 = vsel %vm549, %v530, 0
        %v566 = vsel %vm549, %v531, 0
        %v569 = vsel %vm549, %v532, 0
        %v572 = vsel %vm549, %v533, 0
        %574 = vmatprep.subr.mxu0 0.0
        %575 = vmatpush1.msra.mxu0 0.0
        %576 = vmatprep.subr.mxu0 0.0
        %577 = vmatpush1.msra.mxu0 0.0
        %578 = vmatprep.subr.mxu0 0.0
        %579 = vmatpush1.msra.mxu0 0.0
        %580 = vmatprep.subr.mxu0 0.0
        %581 = vmatpush1.msra.mxu0 0.0
        %582 = vmatprep.subr.mxu0 0.0
        %583 = vmatpush1.msra.mxu0 0.0
        %584 = vmatprep.subr.mxu0 0.0
        %585 = vmatpush1.msra.mxu0 0.0
        %586 = vmatprep.subr.mxu0 0.0
        %587 = vmatpush1.msra.mxu0 0.0
        %588 = vmatprep.subr.mxu0 0.0
        %589 = vmatpush1.msra.mxu0 0.0
        %590 = vmatprep.subr.mxu0 0.0
        %591 = vmatpush1.msra.mxu0 %v541
        %592 = vmatprep.subr.mxu0 0.0
        %593 = vmatpush1.msra.mxu0 %v540
        %594 = vmatprep.subr.mxu0 0.0
        %595 = vmatpush1.msra.mxu0 %v539
        %596 = vmatprep.subr.mxu0 0.0
        %597 = vmatpush1.msra.mxu0 %v538
        %598 = vmatprep.subr.mxu0 0.0
        %599 = vmatpush1.msra.mxu0 %v537
        %600 = vmatprep.subr.mxu0 0.0
        %601 = vmatpush1.msra.mxu0 %v536
        %602 = vmatprep.subr.mxu0 0.0
        %603 = vmatpush1.msra.mxu0 %v535
        %604 = vmatprep.subr.mxu0 0.0
        %605 = vmatpush1.msra.mxu0 %v534
        %606 = vmatprep.subr.mxu0 0.0
        %607 = vmatpush2.msra.mxu0 0.0
        %608 = vmatprep.subr.mxu0 0.0
        %609 = vmatpush2.msra.mxu0 0.0
        %610 = vmatprep.subr.mxu0 0.0
        %611 = vmatpush2.msra.mxu0 0.0
        %612 = vmatprep.subr.mxu0 0.0
        %613 = vmatpush2.msra.mxu0 0.0
        %614 = vmatprep.subr.mxu0 0.0
        %615 = vmatpush2.msra.mxu0 0.0
        %616 = vmatprep.subr.mxu0 0.0
        %617 = vmatpush2.msra.mxu0 0.0
        %618 = vmatprep.subr.mxu0 0.0
        %619 = vmatpush2.msra.mxu0 0.0
        %620 = vmatprep.subr.mxu0 0.0
        %621 = vmatpush2.msra.mxu0 0.0
        %622 = vmatprep.subr.mxu0 0.0
        %623 = vmatpush2.msra.mxu0 0.0
        %624 = vmatprep.subr.mxu0 0.0
        %625 = vmatpush2.msra.mxu0 0.0
        %626 = vmatprep.subr.mxu0 0.0
        %627 = vmatpush2.msra.mxu0 0.0
        %628 = vmatprep.subr.mxu0 0.0
        %629 = vmatpush2.msra.mxu0 0.0
        %630 = vmatprep.subr.mxu0 0.0
        %631 = vmatpush2.msra.mxu0 0.0
        %632 = vmatprep.subr.mxu0 0.0
        %633 = vmatpush2.msra.mxu0 0.0
        %634 = vmatprep.subr.mxu0 0.0
        %635 = vmatpush2.msra.mxu0 0.0
        %636 = vmatprep.subr.mxu0 0.0
        %637 = vmatpush2.msra.mxu0 0.0
        %638 = vmatprep.mubr.f32.mxu0 0.0
        %639 = vmatmul.mubr.f32.gmra.mxu0 %v551
        %v640 = vpop.f32.mrf.mxu0
        %v641 = vadd.f32 %v547, %v640
        %v642 = vpop.f32.mrf.mxu0
        %643 = vmatprep.mubr.f32.mxu0 0.0
        %644 = vmatmul.mubr.f32.gmra.mxu0 %v554
        %v645 = vpop.f32.mrf.mxu0
        %v646 = vadd.f32 %v547, %v645
        %v647 = vpop.f32.mrf.mxu0
        %648 = vmatprep.mubr.f32.mxu0 0.0
        %649 = vmatmul.mubr.f32.gmra.mxu0 %v557
        %v650 = vpop.f32.mrf.mxu0
        %v651 = vadd.f32 %v547, %v650
        %v652 = vpop.f32.mrf.mxu0
        %653 = vmatprep.mubr.f32.mxu0 0.0
        %654 = vmatmul.mubr.f32.gmra.mxu0 %v560
        %v655 = vpop.f32.mrf.mxu0
        %v656 = vadd.f32 %v547, %v655
        %v657 = vpop.f32.mrf.mxu0
        %658 = vmatprep.mubr.f32.mxu0 0.0
        %659 = vmatmul.mubr.f32.gmra.mxu0 %v563
        %v660 = vpop.f32.mrf.mxu0
        %v661 = vadd.f32 %v547, %v660
        %v662 = vpop.f32.mrf.mxu0
        %663 = vmatprep.mubr.f32.mxu0 0.0
        %664 = vmatmul.mubr.f32.gmra.mxu0 %v566
        %v665 = vpop.f32.mrf.mxu0
        %v666 = vadd.f32 %v547, %v665
        %v667 = vpop.f32.mrf.mxu0
        %668 = vmatprep.mubr.f32.mxu0 0.0
        %669 = vmatmul.mubr.f32.gmra.mxu0 %v569
        %v670 = vpop.f32.mrf.mxu0
        %v671 = vadd.f32 %v547, %v670
        %v672 = vpop.f32.mrf.mxu0
        %673 = vmatprep.mubr.f32.mxu0 0.0
        %674 = vmatmul.mubr.f32.gmra.mxu0 %v572
        %v675 = vpop.f32.mrf.mxu0
        %v676 = vadd.f32 %v547, %v675
        %v677 = vpop.f32.mrf.mxu0
        %678 = vdwg.mxu0
        %v679 = vmax.f32 %v641, 0.0
        %v680 = vmax.f32 %v646, 0.0
        %v681 = vmax.f32 %v651, 0.0
        %v682 = vmax.f32 %v656, 0.0
        %v683 = vmax.f32 %v661, 0.0
        %v684 = vmax.f32 %v666, 0.0
        %v685 = vmax.f32 %v671, 0.0
        %v686 = vmax.f32 %v676, 0.0
        %v687 = vld [vmem:[%s5] sm:$0xff]
        %v688 = vld [vmem:[%s5 + $0x8] sm:$0xff]
        %v689 = vld [vmem:[%s5 + $0x10] sm:$0xff]
        %v690 = vld [vmem:[%s5 + $0x18] sm:$0xff]
        %v691 = vld [vmem:[%s6] sm:$0x1]
        %v693 = vlaneseq
        %v694 = vshrl.u32 %v693, 7
        %v695 = vsub.s32 0, %v694
        %v696 = vrot.slane %v691, %v695
        %vm698 = vcmask 261120
        %v700 = vsel %vm698, %v679, 0
        %v703 = vsel %vm698, %v680, 0
        %v706 = vsel %vm698, %v681, 0
        %v709 = vsel %vm698, %v682, 0
        %v712 = vsel %vm698, %v683, 0
        %v715 = vsel %vm698, %v684, 0
        %v718 = vsel %vm698, %v685, 0
        %v721 = vsel %vm698, %v686, 0
        %723 = vmatprep.subr.mxu0 0.0
        %724 = vmatpush1.msra.mxu0 0.0
        %725 = vmatprep.subr.mxu0 0.0
        %726 = vmatpush1.msra.mxu0 0.0
        %727 = vmatprep.subr.mxu0 0.0
        %728 = vmatpush1.msra.mxu0 0.0
        %729 = vmatprep.subr.mxu0 0.0
        %730 = vmatpush1.msra.mxu0 0.0
        %731 = vmatprep.subr.mxu0 0.0
        %732 = vmatpush1.msra.mxu0 0.0
        %733 = vmatprep.subr.mxu0 0.0
        %734 = vmatpush1.msra.mxu0 0.0
        %735 = vmatprep.subr.mxu0 0.0
        %736 = vmatpush1.msra.mxu0 0.0
        %737 = vmatprep.subr.mxu0 0.0
        %738 = vmatpush1.msra.mxu0 0.0
        %739 = vmatprep.subr.mxu0 0.0
        %740 = vmatpush1.msra.mxu0 0.0
        %741 = vmatprep.subr.mxu0 0.0
        %742 = vmatpush1.msra.mxu0 0.0
        %743 = vmatprep.subr.mxu0 0.0
        %744 = vmatpush1.msra.mxu0 0.0
        %745 = vmatprep.subr.mxu0 0.0
        %746 = vmatpush1.msra.mxu0 0.0
        %747 = vmatprep.subr.mxu0 0.0
        %748 = vmatpush1.msra.mxu0 %v690
        %749 = vmatprep.subr.mxu0 0.0
        %750 = vmatpush1.msra.mxu0 %v689
        %751 = vmatprep.subr.mxu0 0.0
        %752 = vmatpush1.msra.mxu0 %v688
        %753 = vmatprep.subr.mxu0 0.0
        %754 = vmatpush1.msra.mxu0 %v687
        %755 = vmatprep.subr.mxu0 0.0
        %756 = vmatpush2.msra.mxu0 0.0
        %757 = vmatprep.subr.mxu0 0.0
        %758 = vmatpush2.msra.mxu0 0.0
        %759 = vmatprep.subr.mxu0 0.0
        %760 = vmatpush2.msra.mxu0 0.0
        %761 = vmatprep.subr.mxu0 0.0
        %762 = vmatpush2.msra.mxu0 0.0
        %763 = vmatprep.subr.mxu0 0.0
        %764 = vmatpush2.msra.mxu0 0.0
        %765 = vmatprep.subr.mxu0 0.0
        %766 = vmatpush2.msra.mxu0 0.0
        %767 = vmatprep.subr.mxu0 0.0
        %768 = vmatpush2.msra.mxu0 0.0
        %769 = vmatprep.subr.mxu0 0.0
        %770 = vmatpush2.msra.mxu0 0.0
        %771 = vmatprep.subr.mxu0 0.0
        %772 = vmatpush2.msra.mxu0 0.0
        %773 = vmatprep.subr.mxu0 0.0
        %774 = vmatpush2.msra.mxu0 0.0
        %775 = vmatprep.subr.mxu0 0.0
        %776 = vmatpush2.msra.mxu0 0.0
        %777 = vmatprep.subr.mxu0 0.0
        %778 = vmatpush2.msra.mxu0 0.0
        %779 = vmatprep.subr.mxu0 0.0
        %780 = vmatpush2.msra.mxu0 0.0
        %781 = vmatprep.subr.mxu0 0.0
        %782 = vmatpush2.msra.mxu0 0.0
        %783 = vmatprep.subr.mxu0 0.0
        %784 = vmatpush2.msra.mxu0 0.0
        %785 = vmatprep.subr.mxu0 0.0
        %786 = vmatpush2.msra.mxu0 0.0
        %787 = vmatprep.mubr.f32.mxu0 0.0
        %788 = vmatmul.mubr.f32.gmra.mxu0 %v700
        %v789 = vpop.f32.mrf.mxu0
        %v790 = vadd.f32 %v696, %v789
        %v791 = vpop.f32.mrf.mxu0
        %792 = vmatprep.mubr.f32.mxu0 0.0
        %793 = vmatmul.mubr.f32.gmra.mxu0 %v703
        %v794 = vpop.f32.mrf.mxu0
        %v795 = vadd.f32 %v696, %v794
        %v796 = vpop.f32.mrf.mxu0
        %797 = vmatprep.mubr.f32.mxu0 0.0
        %798 = vmatmul.mubr.f32.gmra.mxu0 %v706
        %v799 = vpop.f32.mrf.mxu0
        %v800 = vadd.f32 %v696, %v799
        %v801 = vpop.f32.mrf.mxu0
        %802 = vmatprep.mubr.f32.mxu0 0.0
        %803 = vmatmul.mubr.f32.gmra.mxu0 %v709
        %v804 = vpop.f32.mrf.mxu0
        %v805 = vadd.f32 %v696, %v804
        %v806 = vpop.f32.mrf.mxu0
        %807 = vmatprep.mubr.f32.mxu0 0.0
        %808 = vmatmul.mubr.f32.gmra.mxu0 %v712
        %v809 = vpop.f32.mrf.mxu0
        %v810 = vadd.f32 %v696, %v809
        %v811 = vpop.f32.mrf.mxu0
        %812 = vmatprep.mubr.f32.mxu0 0.0
        %813 = vmatmul.mubr.f32.gmra.mxu0 %v715
        %v814 = vpop.f32.mrf.mxu0
        %v815 = vadd.f32 %v696, %v814
        %v816 = vpop.f32.mrf.mxu0
        %817 = vmatprep.mubr.f32.mxu0 0.0
        %818 = vmatmul.mubr.f32.gmra.mxu0 %v718
        %v819 = vpop.f32.mrf.mxu0
        %v820 = vadd.f32 %v696, %v819
        %v821 = vpop.f32.mrf.mxu0
        %822 = vmatprep.mubr.f32.mxu0 0.0
        %823 = vmatmul.mubr.f32.gmra.mxu0 %v721
        %v824 = vpop.f32.mrf.mxu0
        %v825 = vadd.f32 %v696, %v824
        %v826 = vpop.f32.mrf.mxu0
        %827 = vdwg.mxu0
        %v828 = vmax.f32 %v790, 0.0
        %v829 = vmax.f32 %v795, 0.0
        %v830 = vmax.f32 %v800, 0.0
        %v831 = vmax.f32 %v805, 0.0
        %v832 = vmax.f32 %v810, 0.0
        %v833 = vmax.f32 %v815, 0.0
        %v834 = vmax.f32 %v820, 0.0
        %v835 = vmax.f32 %v825, 0.0
        %v836 = vld [vmem:[#allocation2] sm:$0xff]
        %v837 = vld [vmem:[#allocation2 + $0x8] sm:$0xff]
        %v838 = vld [vmem:[#allocation2 + $0x10] sm:$0xff]
        %v839 = vld [vmem:[#allocation2 + $0x18] sm:$0xff]
        %v840 = vld [vmem:[#allocation2 + $0x20] sm:$0xff]
        %v841 = vld [vmem:[#allocation2 + $0x28] sm:$0xff]
        %v842 = vld [vmem:[#allocation2 + $0x30] sm:$0xff]
        %v843 = vld [vmem:[#allocation2 + $0x38] sm:$0xff]
        %v844 = vld [vmem:[%s8] sm:$0x1]
        %v846 = vlaneseq
        %v847 = vshrl.u32 %v846, 7
        %v848 = vsub.s32 0, %v847
        %v849 = vrot.slane %v844, %v848
        %v852 = vsel %vm549, %v828, 0
        %v855 = vsel %vm549, %v829, 0
        %v858 = vsel %vm549, %v830, 0
        %v861 = vsel %vm549, %v831, 0
        %v864 = vsel %vm549, %v832, 0
        %v867 = vsel %vm549, %v833, 0
        %v870 = vsel %vm549, %v834, 0
        %v873 = vsel %vm549, %v835, 0
        %875 = vmatprep.subr.mxu0 0.0
        %876 = vmatpush1.msra.mxu0 0.0
        %877 = vmatprep.subr.mxu0 0.0
        %878 = vmatpush1.msra.mxu0 0.0
        %879 = vmatprep.subr.mxu0 0.0
        %880 = vmatpush1.msra.mxu0 0.0
        %881 = vmatprep.subr.mxu0 0.0
        %882 = vmatpush1.msra.mxu0 0.0
        %883 = vmatprep.subr.mxu0 0.0
        %884 = vmatpush1.msra.mxu0 0.0
        %885 = vmatprep.subr.mxu0 0.0
        %886 = vmatpush1.msra.mxu0 0.0
        %887 = vmatprep.subr.mxu0 0.0
        %888 = vmatpush1.msra.mxu0 0.0
        %889 = vmatprep.subr.mxu0 0.0
        %890 = vmatpush1.msra.mxu0 0.0
        %891 = vmatprep.subr.mxu0 0.0
        %892 = vmatpush1.msra.mxu0 %v843
        %893 = vmatprep.subr.mxu0 0.0
        %894 = vmatpush1.msra.mxu0 %v842
        %895 = vmatprep.subr.mxu0 0.0
        %896 = vmatpush1.msra.mxu0 %v841
        %897 = vmatprep.subr.mxu0 0.0
        %898 = vmatpush1.msra.mxu0 %v840
        %899 = vmatprep.subr.mxu0 0.0
        %900 = vmatpush1.msra.mxu0 %v839
        %901 = vmatprep.subr.mxu0 0.0
        %902 = vmatpush1.msra.mxu0 %v838
        %903 = vmatprep.subr.mxu0 0.0
        %904 = vmatpush1.msra.mxu0 %v837
        %905 = vmatprep.subr.mxu0 0.0
        %906 = vmatpush1.msra.mxu0 %v836
        %907 = vmatprep.subr.mxu0 0.0
        %908 = vmatpush2.msra.mxu0 0.0
        %909 = vmatprep.subr.mxu0 0.0
        %910 = vmatpush2.msra.mxu0 0.0
        %911 = vmatprep.subr.mxu0 0.0
        %912 = vmatpush2.msra.mxu0 0.0
        %913 = vmatprep.subr.mxu0 0.0
        %914 = vmatpush2.msra.mxu0 0.0
        %915 = vmatprep.subr.mxu0 0.0
        %916 = vmatpush2.msra.mxu0 0.0
        %917 = vmatprep.subr.mxu0 0.0
        %918 = vmatpush2.msra.mxu0 0.0
        %919 = vmatprep.subr.mxu0 0.0
        %920 = vmatpush2.msra.mxu0 0.0
        %921 = vmatprep.subr.mxu0 0.0
        %922 = vmatpush2.msra.mxu0 0.0
        %923 = vmatprep.subr.mxu0 0.0
        %924 = vmatpush2.msra.mxu0 0.0
        %925 = vmatprep.subr.mxu0 0.0
        %926 = vmatpush2.msra.mxu0 0.0
        %927 = vmatprep.subr.mxu0 0.0
        %928 = vmatpush2.msra.mxu0 0.0
        %929 = vmatprep.subr.mxu0 0.0
        %930 = vmatpush2.msra.mxu0 0.0
        %931 = vmatprep.subr.mxu0 0.0
        %932 = vmatpush2.msra.mxu0 0.0
        %933 = vmatprep.subr.mxu0 0.0
        %934 = vmatpush2.msra.mxu0 0.0
        %935 = vmatprep.subr.mxu0 0.0
        %936 = vmatpush2.msra.mxu0 0.0
        %937 = vmatprep.subr.mxu0 0.0
        %938 = vmatpush2.msra.mxu0 0.0
        %939 = vmatprep.mubr.f32.mxu0 0.0
        %940 = vmatmul.mubr.f32.gmra.mxu0 %v852
        %v941 = vpop.f32.mrf.mxu0
        %v942 = vadd.f32 %v849, %v941
        %v943 = vpop.f32.mrf.mxu0
        %944 = vmatprep.mubr.f32.mxu0 0.0
        %945 = vmatmul.mubr.f32.gmra.mxu0 %v855
        %v946 = vpop.f32.mrf.mxu0
        %v947 = vadd.f32 %v849, %v946
        %v948 = vpop.f32.mrf.mxu0
        %949 = vmatprep.mubr.f32.mxu0 0.0
        %950 = vmatmul.mubr.f32.gmra.mxu0 %v858
        %v951 = vpop.f32.mrf.mxu0
        %v952 = vadd.f32 %v849, %v951
        %v953 = vpop.f32.mrf.mxu0
        %954 = vmatprep.mubr.f32.mxu0 0.0
        %955 = vmatmul.mubr.f32.gmra.mxu0 %v861
        %v956 = vpop.f32.mrf.mxu0
        %v957 = vadd.f32 %v849, %v956
        %v958 = vpop.f32.mrf.mxu0
        %959 = vmatprep.mubr.f32.mxu0 0.0
        %960 = vmatmul.mubr.f32.gmra.mxu0 %v864
        %v961 = vpop.f32.mrf.mxu0
        %v962 = vadd.f32 %v849, %v961
        %v963 = vpop.f32.mrf.mxu0
        %964 = vmatprep.mubr.f32.mxu0 0.0
        %965 = vmatmul.mubr.f32.gmra.mxu0 %v867
        %v966 = vpop.f32.mrf.mxu0
        %v967 = vadd.f32 %v849, %v966
        %v968 = vpop.f32.mrf.mxu0
        %969 = vmatprep.mubr.f32.mxu0 0.0
        %970 = vmatmul.mubr.f32.gmra.mxu0 %v870
        %v971 = vpop.f32.mrf.mxu0
        %v972 = vadd.f32 %v849, %v971
        %v973 = vpop.f32.mrf.mxu0
        %974 = vmatprep.mubr.f32.mxu0 0.0
        %975 = vmatmul.mubr.f32.gmra.mxu0 %v873
        %v976 = vpop.f32.mrf.mxu0
        %v977 = vadd.f32 %v849, %v976
        %v978 = vpop.f32.mrf.mxu0
        %979 = vdwg.mxu0
        %v980 = vsub.f32 0.0, %v942
        %v981 = vsub.f32 0.0, %v947
        %v982 = vsub.f32 0.0, %v952
        %v983 = vsub.f32 0.0, %v957
        %v984 = vsub.f32 0.0, %v962
        %v985 = vsub.f32 0.0, %v967
        %v986 = vsub.f32 0.0, %v972
        %v987 = vsub.f32 0.0, %v977
        %v988 = vmul.f32 %v980, 1.442695
        %v989 = vpow.pop %v988
        %v990 = vmul.f32 %v981, 1.442695
        %v991 = vpow.pop %v990
        %v992 = vmul.f32 %v982, 1.442695
        %v993 = vpow.pop %v992
        %v994 = vmul.f32 %v983, 1.442695
        %v995 = vpow.pop %v994
        %v996 = vmul.f32 %v984, 1.442695
        %v997 = vpow.pop %v996
        %v998 = vmul.f32 %v985, 1.442695
        %v999 = vpow.pop %v998
        %v1000 = vmul.f32 %v986, 1.442695
        %v1001 = vpow.pop %v1000
        %v1002 = vmul.f32 %v987, 1.442695
        %v1003 = vpow.pop %v1002
        %v1004 = vadd.f32 %v989, 1.0
        %v1005 = vadd.f32 %v991, 1.0
        %v1006 = vadd.f32 %v993, 1.0
        %v1007 = vadd.f32 %v995, 1.0
        %v1008 = vadd.f32 %v997, 1.0
        %v1009 = vadd.f32 %v999, 1.0
        %v1010 = vadd.f32 %v1001, 1.0
        %v1011 = vadd.f32 %v1003, 1.0
        %v1012 = vrcp.pop %v1004
        %v1013 = vrcp.pop %v1005
        %v1014 = vrcp.pop %v1006
        %v1015 = vrcp.pop %v1007
        %v1016 = vrcp.pop %v1008
        %v1017 = vrcp.pop %v1009
        %v1018 = vrcp.pop %v1010
        %v1019 = vrcp.pop %v1011
        %1020 = vst [vmem:[%s369] sm:$0xff] %v1012
        %1021 = vst [vmem:[%s369 + $0x8] sm:$0xff] %v1013
        %1022 = vst [vmem:[%s369 + $0x10] sm:$0xff] %v1014
        %1023 = vst [vmem:[%s369 + $0x18] sm:$0xff] %v1015
        %1024 = vst [vmem:[%s369 + $0x20] sm:$0xff] %v1016
        %1025 = vst [vmem:[%s369 + $0x28] sm:$0xff] %v1017
        %1026 = vst [vmem:[%s369 + $0x30] sm:$0xff] %v1018
        %1027 = vst [vmem:[%s369 + $0x38] sm:$0xff] %v1019
        %1028 = vst.msk [vmem:[%s388] sm:$0xff] %vm698, %v679
        %1029 = vst.msk [vmem:[%s388 + $0x8] sm:$0xff] %vm698, %v680
        %1030 = vst.msk [vmem:[%s388 + $0x10] sm:$0xff] %vm698, %v681
        %1031 = vst.msk [vmem:[%s388 + $0x18] sm:$0xff] %vm698, %v682
        %1032 = vst.msk [vmem:[%s388 + $0x20] sm:$0xff] %vm698, %v683
        %1033 = vst.msk [vmem:[%s388 + $0x28] sm:$0xff] %vm698, %v684
        %1034 = vst.msk [vmem:[%s388 + $0x30] sm:$0xff] %vm698, %v685
        %1035 = vst.msk [vmem:[%s388 + $0x38] sm:$0xff] %vm698, %v686
        %s1036 = sand.u32 %s228, 1
        %s1037 = scalar_lea.sflag [#allocation4], %s1036
        %s1038 = sand.u32 %s228, 1
        %s1039 = smul.addr %s1038, 64
        %s1040 = scalar_lea.vmem [#allocation5], %s1039
        %s1041 = smul.u32 8, %s26
        %p1042 = scmp.lt.s32.totalorder %s1041, 31
        %s1043 = scalar_select %p1042, %s1041, 31
        %s1044 = smul.addr %s1043, 8
        %s1045 = scalar_lea.vmem %s10, %s1044
        // Predicated region
        $region61: #{tpu_custom_call.1} parent=55 // pred_check
          %p1046 = pneg %p238
        $region62: #{tpu_custom_call.1} parent=55 // pred_check_branch
          %1048 = sbr.rel (%p1046) target = $region64
        $region63: #{tpu_custom_call.1} parent=55 // pred_region
          %s1049 = smul.u32 8, %s26
          %s1051 = ssub.s32 1024, 1024
          %1052 = vsyncadd %s1037, %s1051
          %s1053 = smul.addr %s1049, 128
          %s1054 = scalar_lea.hbm %s9, %s1053
          %s1055 = sshll.u32 %s1040, 4
          %s1056 = int_to_ptr.vmem [resolvable:$true] %s1055
          %1061 = dma.vmem_to_hbm [thread:$0]  %s1056, 1024, %s1054, %s1037, 128, 128, 8
        $region64: #{tpu_custom_call.1} parent=55 // pred_fallthru
          _
        // Predicated region
        $region65: #{tpu_custom_call.1} parent=55 // pred_check
          %p1062 = pneg %p264
        $region66: #{tpu_custom_call.1} parent=55 // pred_check_branch
          %1064 = sbr.rel (%p1062) target = $region68
        $region67: #{tpu_custom_call.1} parent=55 // pred_region
          %s1065 = smul.u32 8, %s26
        $region68: #{tpu_custom_call.1} parent=55 // pred_fallthru
          _
      $region56: #{tpu_custom_call.1} parent=5 // pred_fallthru
        _
      %p1066 = scmp.le.s32.totalorder 2, %s21
      // Predicated region
      $region69: #{tpu_custom_call.1} parent=5 // pred_check
        %p1067 = pneg %p1066
      $region70: #{tpu_custom_call.1} parent=5 // pred_check_branch
        %1069 = sbr.rel (%p1067) target = $region72
      $region71: #{tpu_custom_call.1} parent=5 // pred_region
        %s1070 = ssub.s32 %s21, 2
        // Predicated region
        $region73: #{tpu_custom_call.1} parent=71 // pred_check
          %p1071 = pneg %p244
        $region74: #{tpu_custom_call.1} parent=71 // pred_check_branch
          %1073 = sbr.rel (%p1071) target = $region76
        $region75: #{tpu_custom_call.1} parent=71 // pred_region
          %s1074 = sand.u32 %s229, 1
          %s1075 = scalar_lea.sflag [#allocation4], %s1074
          %s1076 = sand.u32 %s229, 1
          %s1077 = smul.addr %s1076, 64
          %s1078 = scalar_lea.vmem [#allocation5], %s1077
          %1079 = dma.done %s1075, 1024
        $region76: #{tpu_custom_call.1} parent=71 // pred_fallthru
          _
        // Predicated region
        $region77: #{tpu_custom_call.1} parent=71 // pred_check
          %p1080 = pneg %p270
        $region78: #{tpu_custom_call.1} parent=71 // pred_check_branch
          %1082 = sbr.rel (%p1080) target = $region80
        $region79: #{tpu_custom_call.1} parent=71 // pred_region
          %s1083 = smul.u32 8, %s27
          %p1084 = scmp.lt.s32.totalorder %s1083, 31
          %s1085 = scalar_select %p1084, %s1083, 31
          %s1086 = smul.addr %s1085, 8
          %s1087 = scalar_lea.vmem %s10, %s1086
        $region80: #{tpu_custom_call.1} parent=71 // pred_fallthru
          _
      $region72: #{tpu_custom_call.1} parent=5 // pred_fallthru
        _
    $region6: #{tpu_custom_call.1} parent=1 // loop_footer
      %s25 = sadd.s32 1, %s21
    $region7: #{tpu_custom_call.1} parent=1 // loop_footer_branch
      %20 = sbr.rel target = $region3
    $region8: #{tpu_custom_call.1} parent=1 // loop_exit
      _
    %1088 = vsyncpa [#allocation3], 1
    %s1089 = scalar_lea.sflag [#allocation3], 1
    %1090 = vsyncpa %s1089, 1
    %1091 = vsyncpa [#allocation4], 1
    %s1092 = scalar_lea.sflag [#allocation4], 1
    %1093 = vsyncpa %s1092, 1

</llo_original>
